<compile_context>
chip_gen: v7x
topology: tpu7x:2x2x1
jax: 0.10.0
libtpu: 0.0.40
codegen_flags: <defaults>
</compile_context>

<pallas_src>
import functools
import numpy as np
import jax
import jax.numpy as jnp
from jax.experimental import pallas as pl
from jax.experimental.pallas import tpu as pltpu


def _transformer_layer_kernel(x_ref, wqkv_ref, bqkv_ref, wproj_ref, bproj_ref,
                              w1_ref, bm1_ref, w2_ref, bm2_ref, o_ref,
                              *, num_heads, eps):
    f32 = jnp.float32
    bf16 = jnp.bfloat16

    x = x_ref[...].astype(f32)                          # (N, C)
    N, C = x.shape
    dh = C // num_heads

    # ---- LayerNorm 1 (affine folded into W_qkv / b_qkv host-side) -----------
    mu = jnp.mean(x, axis=-1, keepdims=True)
    var = jnp.mean((x - mu) ** 2, axis=-1, keepdims=True)
    xhat = (x - mu) * jax.lax.rsqrt(var + eps)

    # ---- QKV projection: single lane-dense (N,C)@(C,3C) bf16 MXU matmul -----
    # (gamma1 folded into rows, beta1 folded into the bias, softmax scale
    #  folded into the Q columns)
    qkv = jnp.dot(xhat.astype(bf16), wqkv_ref[...],
                  preferred_element_type=f32) + bqkv_ref[...]      # (N, 3C)

    def split_heads(m):                                 # (N, C) -> (H, N, dh)
        return jnp.stack(
            [m[:, h * dh:(h + 1) * dh] for h in range(num_heads)], axis=0)

    q = split_heads(qkv[:, 0:C]).astype(bf16)
    k = split_heads(qkv[:, C:2 * C]).astype(bf16)
    v = split_heads(qkv[:, 2 * C:3 * C]).astype(bf16)

    # ---- Attention: batched over heads (no static per-head unroll) ----------
    s = jnp.einsum('hnd,hmd->hnm', q, k,
                   preferred_element_type=f32)          # (H, N, N) f32
    s = s - jnp.max(s, axis=-1, keepdims=True)
    p = jnp.exp(s)
    p = p * pl.reciprocal(jnp.sum(p, axis=-1, keepdims=True), approx=True)
    ctx = jnp.einsum('hnm,hmd->hnd', p.astype(bf16), v,
                     preferred_element_type=f32)        # (H, N, dh)

    # Head-merge fused with output projection: attn = sum_h ctx_h @ Wproj_h
    attn = jnp.einsum('hnd,hdc->hnc', ctx.astype(bf16), wproj_ref[...],
                      preferred_element_type=f32)
    attn = jnp.sum(attn, axis=0) + bproj_ref[...]       # (N, C)

    x1 = x + attn                                       # residual 1

    # ---- LayerNorm 2 (affine folded into W_mlp1 / b_mlp1 host-side) ---------
    mu2 = jnp.mean(x1, axis=-1, keepdims=True)
    var2 = jnp.mean((x1 - mu2) ** 2, axis=-1, keepdims=True)
    xhat2 = (x1 - mu2) * jax.lax.rsqrt(var2 + eps)

    # ---- MLP: Linear -> GELU (exact erf) -> Linear ---------------------------
    h1 = jnp.dot(xhat2.astype(bf16), w1_ref[...],
                 preferred_element_type=f32) + bm1_ref[...]
    h1 = 0.5 * h1 * (1.0 + jax.lax.erf(h1 * jnp.float32(1.0 / np.sqrt(2.0))))
    mlp = jnp.dot(h1.astype(bf16), w2_ref[...],
                  preferred_element_type=f32) + bm2_ref[...]

    o_ref[...] = (x1 + mlp).astype(o_ref.dtype)         # residual 2


def transformer_layer(x, params, *, num_heads, eps=1e-5):
    B, N, C = x.shape
    dh = C // num_heads
    scale = float(dh ** (-0.5))
    f32 = jnp.float32
    bf16 = jnp.bfloat16

    # ---- Host-side weight prep (done once, outside the kernel) --------------
    g1 = params["g1"].reshape(C).astype(f32)
    b1 = params["b1"].reshape(1, C).astype(f32)
    g2 = params["g2"].reshape(C).astype(f32)
    b2 = params["b2"].reshape(1, C).astype(f32)

    # QKV: transpose (contraction dim leads), fold softmax scale into Q cols,
    # then fold LN1 affine (gamma -> rows, beta -> bias).
    w_qkv_t = params["w_qkv"].T.astype(f32)                  # (C, 3C)
    w_qkv_t = w_qkv_t.at[:, 0:C].multiply(scale)
    b_qkv = (b1 @ w_qkv_t).astype(f32)                       # (1, 3C)
    w_qkv_f = (g1[:, None] * w_qkv_t).astype(bf16)           # (C, 3C) bf16

    # Output projection split per head (fuses head-merge with projection).
    w_proj_h = params["w_proj"].T.reshape(num_heads, dh, C).astype(bf16)
    b_proj = params["b_proj"].reshape(1, C).astype(f32)

    # MLP fc1: transpose, fold LN2 affine into weight rows and existing bias.
    w1_t = params["w_mlp1"].T.astype(f32)                    # (C, hidden)
    b_m1 = (b2 @ w1_t + params["b_mlp1"].reshape(1, -1)).astype(f32)
    w1_f = (g2[:, None] * w1_t).astype(bf16)                 # (C, hidden) bf16

    w2_f = params["w_mlp2"].T.astype(bf16)                   # (hidden, C) bf16
    b_m2 = params["b_mlp2"].reshape(1, C).astype(f32)

    kernel = functools.partial(_transformer_layer_kernel,
                               num_heads=num_heads, eps=eps)

    # Grid-invariant weights/biases: whole array resident in VMEM (no blocked
    # double-buffered pipelining / per-step re-DMA).
    vmem_res = pl.BlockSpec(memory_space=pltpu.MemorySpace.VMEM)

    in_specs = [
        pl.BlockSpec((None, N, C), lambda b: (b, 0, 0)),   # x -> (N, C) ref
        vmem_res, vmem_res,                                 # qkv weight / bias
        vmem_res, vmem_res,                                 # proj weight / bias
        vmem_res, vmem_res,                                 # mlp fc1 weight / bias
        vmem_res, vmem_res,                                 # mlp fc2 weight / bias
    ]
    return pl.pallas_call(
        kernel,
        out_shape=jax.ShapeDtypeStruct((B, N, C), x.dtype),
        grid=(B,),
        in_specs=in_specs,
        out_specs=pl.BlockSpec((None, N, C), lambda b: (b, 0, 0)),
        compiler_params=pltpu.CompilerParams(
            dimension_semantics=("parallel",),
            vmem_limit_bytes=64 * 1024 * 1024),
    )(x, w_qkv_f, b_qkv, w_proj_h, b_proj, w1_f, b_m1, w2_f, b_m2)


def reference(x, p, num_heads):
    """Pure-JAX f32 replica of the PyTorch forward, used for verification."""
    B, N, C = x.shape
    scale = (C // num_heads) ** (-0.5)

    def ln(z, g, b):
        mu = z.mean(-1, keepdims=True)
        var = ((z - mu) ** 2).mean(-1, keepdims=True)
        return (z - mu) / jnp.sqrt(var + 1e-5) * g + b

    xn = ln(x, p["g1"][0], p["b1"][0])
    qkv = xn @ p["w_qkv"].T
    qkv = qkv.reshape(B, N, 3, num_heads, C // num_heads).transpose(2, 0, 3, 1, 4)
    q, k, v = qkv[0], qkv[1], qkv[2]
    a = (q * scale) @ jnp.swapaxes(k, -2, -1)
    a = jax.nn.softmax(a, axis=-1)
    o = (a @ v).transpose(0, 2, 1, 3).reshape(B, N, C)
    o = o @ p["w_proj"].T + p["b_proj"][0]
    x1 = x + o
    xn2 = ln(x1, p["g2"][0], p["b2"][0])
    h = xn2 @ p["w_mlp1"].T + p["b_mlp1"][0]
    h = 0.5 * h * (1.0 + jax.lax.erf(h / jnp.sqrt(2.0)))
    m = h @ p["w_mlp2"].T + p["b_mlp2"][0]
    return x1 + m


if __name__ == "__main__":
    # Small but lane-aligned config: dim=128, num_heads=4 (dh=32), mlp_ratio=4
    # -> hidden=512, seq=8, batch=2.
    B, N, C = 2, 8, 128
    num_heads = 4
    hidden = int(C * 4.0)

    key = jax.random.PRNGKey(0)
    ks = jax.random.split(key, 12)
    params = {
        "g1": 1.0 + 0.1 * jax.random.normal(ks[0], (1, C), jnp.float32),
        "b1": 0.1 * jax.random.normal(ks[1], (1, C), jnp.float32),
        "w_qkv": 0.05 * jax.random.normal(ks[2], (3 * C, C), jnp.float32),
        "w_proj": 0.05 * jax.random.normal(ks[3], (C, C), jnp.float32),
        "b_proj": 0.05 * jax.random.normal(ks[4], (1, C), jnp.float32),
        "g2": 1.0 + 0.1 * jax.random.normal(ks[5], (1, C), jnp.float32),
        "b2": 0.1 * jax.random.normal(ks[6], (1, C), jnp.float32),
        "w_mlp1": 0.05 * jax.random.normal(ks[7], (hidden, C), jnp.float32),
        "b_mlp1": 0.05 * jax.random.normal(ks[8], (1, hidden), jnp.float32),
        "w_mlp2": 0.05 * jax.random.normal(ks[9], (C, hidden), jnp.float32),
        "b_mlp2": 0.05 * jax.random.normal(ks[10], (1, C), jnp.float32),
    }
    x = jax.random.normal(ks[11], (B, N, C), jnp.float32)

    out = jax.block_until_ready(transformer_layer(x, params, num_heads=num_heads))
    ref = jax.block_until_ready(reference(x, params, num_heads))

    # Kernel uses bf16 MXU matmuls with f32 accumulation vs. a pure-f32
    # reference -> compare with a bf16-appropriate tolerance.
    np.testing.assert_allclose(np.asarray(out), np.asarray(ref),
                               rtol=3e-2, atol=3e-2)
    print("KERNEL_OK")
</pallas_src>

<mosaic_0001>
module attributes {stable_mosaic.version = 11 : i64} {
  func.func @_transformer_layer_kernel(%arg0: i32, %arg1: memref<1x8x128xf32, #tpu.memory_space<vmem>>, %arg2: memref<128x384xbf16, #tpu.memory_space<vmem>>, %arg3: memref<1x384xf32, #tpu.memory_space<vmem>>, %arg4: memref<4x32x128xbf16, #tpu.memory_space<vmem>>, %arg5: memref<1x128xf32, #tpu.memory_space<vmem>>, %arg6: memref<128x512xbf16, #tpu.memory_space<vmem>>, %arg7: memref<1x512xf32, #tpu.memory_space<vmem>>, %arg8: memref<512x128xbf16, #tpu.memory_space<vmem>>, %arg9: memref<1x128xf32, #tpu.memory_space<vmem>>, %arg10: memref<1x8x128xf32, #tpu.memory_space<vmem>>) attributes {dimension_semantics = [#tpu.dimension_semantics<parallel>], iteration_bounds = array<i64: 2>, scalar_prefetch = 0 : i64, scratch_operands = 0 : i64, tpu.core_type = #tpu.core_type<tc>, window_params = [{transform_indices = @transform_0, window_bounds = array<i64: 1, 8, 128>}, {pipeline_mode = #tpu.pipeline_mode<synchronous>, transform_indices = @transform_1, window_bounds = array<i64: 128, 384>}, {pipeline_mode = #tpu.pipeline_mode<synchronous>, transform_indices = @transform_2, window_bounds = array<i64: 1, 384>}, {pipeline_mode = #tpu.pipeline_mode<synchronous>, transform_indices = @transform_3, window_bounds = array<i64: 4, 32, 128>}, {pipeline_mode = #tpu.pipeline_mode<synchronous>, transform_indices = @transform_4, window_bounds = array<i64: 1, 128>}, {pipeline_mode = #tpu.pipeline_mode<synchronous>, transform_indices = @transform_5, window_bounds = array<i64: 128, 512>}, {pipeline_mode = #tpu.pipeline_mode<synchronous>, transform_indices = @transform_6, window_bounds = array<i64: 1, 512>}, {pipeline_mode = #tpu.pipeline_mode<synchronous>, transform_indices = @transform_7, window_bounds = array<i64: 512, 128>}, {pipeline_mode = #tpu.pipeline_mode<synchronous>, transform_indices = @transform_8, window_bounds = array<i64: 1, 128>}, {transform_indices = @transform_9, window_bounds = array<i64: 1, 8, 128>}]} {
    %c0 = arith.constant 0 : index
    %c0_0 = arith.constant 0 : index
    %c0_1 = arith.constant 0 : index
    %0 = vector.load %arg1[%c0, %c0_0, %c0_1] : memref<1x8x128xf32, #tpu.memory_space<vmem>>, vector<1x8x128xf32>
    %1 = vector.shape_cast %0 : vector<1x8x128xf32> to vector<8x128xf32>
    %cst = arith.constant dense<0.000000e+00> : vector<8xf32>
    %2 = vector.multi_reduction <add>, %1, %cst [1] : vector<8x128xf32> to vector<8xf32>
    %3 = vector.shape_cast %2 : vector<8xf32> to vector<8x1xf32>
    %cst_2 = arith.constant 1.280000e+02 : f32
    %4 = vector.broadcast %cst_2 : f32 to vector<8x1xf32>
    %5 = arith.divf %3, %4 : vector<8x1xf32>
    %6 = vector.broadcast %5 : vector<8x1xf32> to vector<8x128xf32>
    %7 = arith.subf %1, %6 : vector<8x128xf32>
    %8 = arith.mulf %7, %7 : vector<8x128xf32>
    %cst_3 = arith.constant dense<0.000000e+00> : vector<8xf32>
    %9 = vector.multi_reduction <add>, %8, %cst_3 [1] : vector<8x128xf32> to vector<8xf32>
    %10 = vector.shape_cast %9 : vector<8xf32> to vector<8x1xf32>
    %cst_4 = arith.constant 1.280000e+02 : f32
    %11 = vector.broadcast %cst_4 : f32 to vector<8x1xf32>
    %12 = arith.divf %10, %11 : vector<8x1xf32>
    %13 = vector.broadcast %5 : vector<8x1xf32> to vector<8x128xf32>
    %14 = arith.subf %1, %13 : vector<8x128xf32>
    %cst_5 = arith.constant 9.99999974E-6 : f32
    %15 = vector.broadcast %cst_5 : f32 to vector<8x1xf32>
    %16 = arith.addf %12, %15 : vector<8x1xf32>
    %17 = math.rsqrt %16 : vector<8x1xf32>
    %18 = vector.broadcast %17 : vector<8x1xf32> to vector<8x128xf32>
    %19 = arith.mulf %14, %18 : vector<8x128xf32>
    %20 = arith.truncf %19 : vector<8x128xf32> to vector<8x128xbf16>
    %c0_6 = arith.constant 0 : index
    %c0_7 = arith.constant 0 : index
    %21 = vector.load %arg2[%c0_6, %c0_7] : memref<128x384xbf16, #tpu.memory_space<vmem>>, vector<128x384xbf16>
    %cst_8 = arith.constant dense<0.000000e+00> : vector<8x384xf32>
    %22 = tpu.matmul %20, %21, %cst_8 {dimension_numbers = #tpu.dot_dimension_numbers<[1], [0], [0], [1], [0, 0, 1, 1], [], []>} : vector<8x128xbf16>, vector<128x384xbf16>, vector<8x384xf32> -> vector<8x384xf32>
    %c0_9 = arith.constant 0 : index
    %c0_10 = arith.constant 0 : index
    %23 = vector.load %arg3[%c0_9, %c0_10] : memref<1x384xf32, #tpu.memory_space<vmem>>, vector<1x384xf32>
    %24 = vector.broadcast %23 : vector<1x384xf32> to vector<8x384xf32>
    %25 = arith.addf %22, %24 : vector<8x384xf32>
    %26 = vector.extract_strided_slice %25 {offsets = [0, 0], sizes = [8, 128], strides = [1, 1]} : vector<8x384xf32> to vector<8x128xf32>
    %27 = vector.extract_strided_slice %26 {offsets = [0, 0], sizes = [8, 32], strides = [1, 1]} : vector<8x128xf32> to vector<8x32xf32>
    %28 = vector.extract_strided_slice %26 {offsets = [0, 32], sizes = [8, 32], strides = [1, 1]} : vector<8x128xf32> to vector<8x32xf32>
    %29 = vector.extract_strided_slice %26 {offsets = [0, 64], sizes = [8, 32], strides = [1, 1]} : vector<8x128xf32> to vector<8x32xf32>
    %30 = vector.extract_strided_slice %26 {offsets = [0, 96], sizes = [8, 32], strides = [1, 1]} : vector<8x128xf32> to vector<8x32xf32>
    %31 = vector.shape_cast %27 : vector<8x32xf32> to vector<1x8x32xf32>
    %32 = vector.shape_cast %28 : vector<8x32xf32> to vector<1x8x32xf32>
    %33 = vector.shape_cast %29 : vector<8x32xf32> to vector<1x8x32xf32>
    %34 = vector.shape_cast %30 : vector<8x32xf32> to vector<1x8x32xf32>
    %35 = tpu.concatenate %31, %32, %33, %34 in 0 : vector<1x8x32xf32>, vector<1x8x32xf32>, vector<1x8x32xf32>, vector<1x8x32xf32> -> vector<4x8x32xf32>
    %36 = arith.truncf %35 : vector<4x8x32xf32> to vector<4x8x32xbf16>
    %37 = vector.extract_strided_slice %25 {offsets = [0, 128], sizes = [8, 128], strides = [1, 1]} : vector<8x384xf32> to vector<8x128xf32>
    %38 = vector.extract_strided_slice %37 {offsets = [0, 0], sizes = [8, 32], strides = [1, 1]} : vector<8x128xf32> to vector<8x32xf32>
    %39 = vector.extract_strided_slice %37 {offsets = [0, 32], sizes = [8, 32], strides = [1, 1]} : vector<8x128xf32> to vector<8x32xf32>
    %40 = vector.extract_strided_slice %37 {offsets = [0, 64], sizes = [8, 32], strides = [1, 1]} : vector<8x128xf32> to vector<8x32xf32>
    %41 = vector.extract_strided_slice %37 {offsets = [0, 96], sizes = [8, 32], strides = [1, 1]} : vector<8x128xf32> to vector<8x32xf32>
    %42 = vector.shape_cast %38 : vector<8x32xf32> to vector<1x8x32xf32>
    %43 = vector.shape_cast %39 : vector<8x32xf32> to vector<1x8x32xf32>
    %44 = vector.shape_cast %40 : vector<8x32xf32> to vector<1x8x32xf32>
    %45 = vector.shape_cast %41 : vector<8x32xf32> to vector<1x8x32xf32>
    %46 = tpu.concatenate %42, %43, %44, %45 in 0 : vector<1x8x32xf32>, vector<1x8x32xf32>, vector<1x8x32xf32>, vector<1x8x32xf32> -> vector<4x8x32xf32>
    %47 = arith.truncf %46 : vector<4x8x32xf32> to vector<4x8x32xbf16>
    %48 = vector.extract_strided_slice %25 {offsets = [0, 256], sizes = [8, 128], strides = [1, 1]} : vector<8x384xf32> to vector<8x128xf32>
    %49 = vector.extract_strided_slice %48 {offsets = [0, 0], sizes = [8, 32], strides = [1, 1]} : vector<8x128xf32> to vector<8x32xf32>
    %50 = vector.extract_strided_slice %48 {offsets = [0, 32], sizes = [8, 32], strides = [1, 1]} : vector<8x128xf32> to vector<8x32xf32>
    %51 = vector.extract_strided_slice %48 {offsets = [0, 64], sizes = [8, 32], strides = [1, 1]} : vector<8x128xf32> to vector<8x32xf32>
    %52 = vector.extract_strided_slice %48 {offsets = [0, 96], sizes = [8, 32], strides = [1, 1]} : vector<8x128xf32> to vector<8x32xf32>
    %53 = vector.shape_cast %49 : vector<8x32xf32> to vector<1x8x32xf32>
    %54 = vector.shape_cast %50 : vector<8x32xf32> to vector<1x8x32xf32>
    %55 = vector.shape_cast %51 : vector<8x32xf32> to vector<1x8x32xf32>
    %56 = vector.shape_cast %52 : vector<8x32xf32> to vector<1x8x32xf32>
    %57 = tpu.concatenate %53, %54, %55, %56 in 0 : vector<1x8x32xf32>, vector<1x8x32xf32>, vector<1x8x32xf32>, vector<1x8x32xf32> -> vector<4x8x32xf32>
    %58 = arith.truncf %57 : vector<4x8x32xf32> to vector<4x8x32xbf16>
    "tpu.trace_start"() <{level = 10 : i32, message = "hnd,hmd->hnm"}> : () -> ()
    %cst_11 = arith.constant dense<0.000000e+00> : vector<4x8x8xf32>
    %59 = tpu.matmul %36, %47, %cst_11 {dimension_numbers = #tpu.dot_dimension_numbers<[2], [2], [1], [1], [0, 0, 0, 1, 1, 1], [0], [0]>} : vector<4x8x32xbf16>, vector<4x8x32xbf16>, vector<4x8x8xf32> -> vector<4x8x8xf32>
    "tpu.trace_stop"() : () -> ()
    %cst_12 = arith.constant dense<0xFF800000> : vector<4x8xf32>
    %60 = vector.multi_reduction <maximumf>, %59, %cst_12 [2] : vector<4x8x8xf32> to vector<4x8xf32>
    %61 = vector.shape_cast %60 : vector<4x8xf32> to vector<4x8x1xf32>
    %62 = vector.broadcast %61 : vector<4x8x1xf32> to vector<4x8x8xf32>
    %63 = arith.subf %59, %62 : vector<4x8x8xf32>
    %64 = math.exp %63 : vector<4x8x8xf32>
    %cst_13 = arith.constant dense<0.000000e+00> : vector<4x8xf32>
    %65 = vector.multi_reduction <add>, %64, %cst_13 [2] : vector<4x8x8xf32> to vector<4x8xf32>
    %66 = vector.shape_cast %65 : vector<4x8xf32> to vector<4x8x1xf32>
    %67 = tpu.reciprocal %66 {approx = true} : vector<4x8x1xf32> -> vector<4x8x1xf32>
    %68 = vector.broadcast %67 : vector<4x8x1xf32> to vector<4x8x8xf32>
    %69 = arith.mulf %64, %68 : vector<4x8x8xf32>
    %70 = arith.truncf %69 : vector<4x8x8xf32> to vector<4x8x8xbf16>
    "tpu.trace_start"() <{level = 10 : i32, message = "hnm,hmd->hnd"}> : () -> ()
    %cst_14 = arith.constant dense<0.000000e+00> : vector<4x8x32xf32>
    %71 = tpu.matmul %70, %58, %cst_14 {dimension_numbers = #tpu.dot_dimension_numbers<[2], [1], [1], [2], [0, 0, 0, 1, 1, 2], [0], [0]>} : vector<4x8x8xbf16>, vector<4x8x32xbf16>, vector<4x8x32xf32> -> vector<4x8x32xf32>
    "tpu.trace_stop"() : () -> ()
    %72 = arith.truncf %71 : vector<4x8x32xf32> to vector<4x8x32xbf16>
    %c0_15 = arith.constant 0 : index
    %c0_16 = arith.constant 0 : index
    %c0_17 = arith.constant 0 : index
    %73 = vector.load %arg4[%c0_15, %c0_16, %c0_17] : memref<4x32x128xbf16, #tpu.memory_space<vmem>>, vector<4x32x128xbf16>
    "tpu.trace_start"() <{level = 10 : i32, message = "hnd,hdc->hnc"}> : () -> ()
    %cst_18 = arith.constant dense<0.000000e+00> : vector<4x8x128xf32>
    %74 = tpu.matmul %72, %73, %cst_18 {dimension_numbers = #tpu.dot_dimension_numbers<[2], [1], [1], [2], [0, 0, 0, 1, 1, 2], [0], [0]>} : vector<4x8x32xbf16>, vector<4x32x128xbf16>, vector<4x8x128xf32> -> vector<4x8x128xf32>
    "tpu.trace_stop"() : () -> ()
    %cst_19 = arith.constant dense<0.000000e+00> : vector<8x128xf32>
    %75 = vector.multi_reduction <add>, %74, %cst_19 [0] : vector<4x8x128xf32> to vector<8x128xf32>
    %c0_20 = arith.constant 0 : index
    %c0_21 = arith.constant 0 : index
    %76 = vector.load %arg5[%c0_20, %c0_21] : memref<1x128xf32, #tpu.memory_space<vmem>>, vector<1x128xf32>
    %77 = vector.broadcast %76 : vector<1x128xf32> to vector<8x128xf32>
    %78 = arith.addf %75, %77 : vector<8x128xf32>
    %79 = arith.addf %1, %78 : vector<8x128xf32>
    %cst_22 = arith.constant dense<0.000000e+00> : vector<8xf32>
    %80 = vector.multi_reduction <add>, %79, %cst_22 [1] : vector<8x128xf32> to vector<8xf32>
    %81 = vector.shape_cast %80 : vector<8xf32> to vector<8x1xf32>
    %cst_23 = arith.constant 1.280000e+02 : f32
    %82 = vector.broadcast %cst_23 : f32 to vector<8x1xf32>
    %83 = arith.divf %81, %82 : vector<8x1xf32>
    %84 = vector.broadcast %83 : vector<8x1xf32> to vector<8x128xf32>
    %85 = arith.subf %79, %84 : vector<8x128xf32>
    %86 = arith.mulf %85, %85 : vector<8x128xf32>
    %cst_24 = arith.constant dense<0.000000e+00> : vector<8xf32>
    %87 = vector.multi_reduction <add>, %86, %cst_24 [1] : vector<8x128xf32> to vector<8xf32>
    %88 = vector.shape_cast %87 : vector<8xf32> to vector<8x1xf32>
    %cst_25 = arith.constant 1.280000e+02 : f32
    %89 = vector.broadcast %cst_25 : f32 to vector<8x1xf32>
    %90 = arith.divf %88, %89 : vector<8x1xf32>
    %91 = vector.broadcast %83 : vector<8x1xf32> to vector<8x128xf32>
    %92 = arith.subf %79, %91 : vector<8x128xf32>
    %cst_26 = arith.constant 9.99999974E-6 : f32
    %93 = vector.broadcast %cst_26 : f32 to vector<8x1xf32>
    %94 = arith.addf %90, %93 : vector<8x1xf32>
    %95 = math.rsqrt %94 : vector<8x1xf32>
    %96 = vector.broadcast %95 : vector<8x1xf32> to vector<8x128xf32>
    %97 = arith.mulf %92, %96 : vector<8x128xf32>
    %98 = arith.truncf %97 : vector<8x128xf32> to vector<8x128xbf16>
    %c0_27 = arith.constant 0 : index
    %c0_28 = arith.constant 0 : index
    %99 = vector.load %arg6[%c0_27, %c0_28] : memref<128x512xbf16, #tpu.memory_space<vmem>>, vector<128x512xbf16>
    %cst_29 = arith.constant dense<0.000000e+00> : vector<8x512xf32>
    %100 = tpu.matmul %98, %99, %cst_29 {dimension_numbers = #tpu.dot_dimension_numbers<[1], [0], [0], [1], [0, 0, 1, 1], [], []>} : vector<8x128xbf16>, vector<128x512xbf16>, vector<8x512xf32> -> vector<8x512xf32>
    %c0_30 = arith.constant 0 : index
    %c0_31 = arith.constant 0 : index
    %101 = vector.load %arg7[%c0_30, %c0_31] : memref<1x512xf32, #tpu.memory_space<vmem>>, vector<1x512xf32>
    %102 = vector.broadcast %101 : vector<1x512xf32> to vector<8x512xf32>
    %103 = arith.addf %100, %102 : vector<8x512xf32>
    %cst_32 = arith.constant 5.000000e-01 : f32
    %104 = vector.broadcast %cst_32 : f32 to vector<8x512xf32>
    %105 = arith.mulf %104, %103 : vector<8x512xf32>
    %cst_33 = arith.constant 0.707106769 : f32
    %106 = vector.broadcast %cst_33 : f32 to vector<8x512xf32>
    %107 = arith.mulf %103, %106 : vector<8x512xf32>
    %108 = math.erf %107 : vector<8x512xf32>
    %cst_34 = arith.constant 1.000000e+00 : f32
    %109 = vector.broadcast %cst_34 : f32 to vector<8x512xf32>
    %110 = arith.addf %109, %108 : vector<8x512xf32>
    %111 = arith.mulf %105, %110 : vector<8x512xf32>
    %112 = arith.truncf %111 : vector<8x512xf32> to vector<8x512xbf16>
    %c0_35 = arith.constant 0 : index
    %c0_36 = arith.constant 0 : index
    %113 = vector.load %arg8[%c0_35, %c0_36] : memref<512x128xbf16, #tpu.memory_space<vmem>>, vector<512x128xbf16>
    %cst_37 = arith.constant dense<0.000000e+00> : vector<8x128xf32>
    %114 = tpu.matmul %112, %113, %cst_37 {dimension_numbers = #tpu.dot_dimension_numbers<[1], [0], [0], [1], [0, 0, 1, 1], [], []>} : vector<8x512xbf16>, vector<512x128xbf16>, vector<8x128xf32> -> vector<8x128xf32>
    %c0_38 = arith.constant 0 : index
    %c0_39 = arith.constant 0 : index
    %115 = vector.load %arg9[%c0_38, %c0_39] : memref<1x128xf32, #tpu.memory_space<vmem>>, vector<1x128xf32>
    %116 = vector.broadcast %115 : vector<1x128xf32> to vector<8x128xf32>
    %117 = arith.addf %114, %116 : vector<8x128xf32>
    %118 = arith.addf %79, %117 : vector<8x128xf32>
    %c0_40 = arith.constant 0 : index
    %c0_41 = arith.constant 0 : index
    %c0_42 = arith.constant 0 : index
    %119 = vector.load %arg10[%c0_40, %c0_41, %c0_42] : memref<1x8x128xf32, #tpu.memory_space<vmem>>, vector<1x8x128xf32>
    %120 = vector.shape_cast %119 : vector<1x8x128xf32> to vector<8x128xf32>
    %121 = vector.shape_cast %118 : vector<8x128xf32> to vector<1x8x128xf32>
    tpu.vector_store %arg10[%c0_40, %c0_41, %c0_42], %121 {strides = array<i32>} : memref<1x8x128xf32, #tpu.memory_space<vmem>>, vector<1x8x128xf32>,
    return
  }
  func.func @transform_0(%arg0: i32) -> (i32, i32, i32) {
    %c0_i32 = arith.constant 0 : i32
    %c0_i32_0 = arith.constant 0 : i32
    %c0_i32_1 = arith.constant 0 : i32
    return %arg0, %c0_i32, %c0_i32_0 : i32, i32, i32
  }
  func.func @transform_1(%arg0: i32) -> (i32, i32) {
    %c0_i32 = arith.constant 0 : i32
    %c0_i32_0 = arith.constant 0 : i32
    %c0_i32_1 = arith.constant 0 : i32
    return %c0_i32, %c0_i32_0 : i32, i32
  }
  func.func @transform_2(%arg0: i32) -> (i32, i32) {
    %c0_i32 = arith.constant 0 : i32
    %c0_i32_0 = arith.constant 0 : i32
    %c0_i32_1 = arith.constant 0 : i32
    return %c0_i32, %c0_i32_0 : i32, i32
  }
  func.func @transform_3(%arg0: i32) -> (i32, i32, i32) {
    %c0_i32 = arith.constant 0 : i32
    %c0_i32_0 = arith.constant 0 : i32
    %c0_i32_1 = arith.constant 0 : i32
    %c0_i32_2 = arith.constant 0 : i32
    return %c0_i32, %c0_i32_0, %c0_i32_1 : i32, i32, i32
  }
  func.func @transform_4(%arg0: i32) -> (i32, i32) {
    %c0_i32 = arith.constant 0 : i32
    %c0_i32_0 = arith.constant 0 : i32
    %c0_i32_1 = arith.constant 0 : i32
    return %c0_i32, %c0_i32_0 : i32, i32
  }
  func.func @transform_5(%arg0: i32) -> (i32, i32) {
    %c0_i32 = arith.constant 0 : i32
    %c0_i32_0 = arith.constant 0 : i32
    %c0_i32_1 = arith.constant 0 : i32
    return %c0_i32, %c0_i32_0 : i32, i32
  }
  func.func @transform_6(%arg0: i32) -> (i32, i32) {
    %c0_i32 = arith.constant 0 : i32
    %c0_i32_0 = arith.constant 0 : i32
    %c0_i32_1 = arith.constant 0 : i32
    return %c0_i32, %c0_i32_0 : i32, i32
  }
  func.func @transform_7(%arg0: i32) -> (i32, i32) {
    %c0_i32 = arith.constant 0 : i32
    %c0_i32_0 = arith.constant 0 : i32
    %c0_i32_1 = arith.constant 0 : i32
    return %c0_i32, %c0_i32_0 : i32, i32
  }
  func.func @transform_8(%arg0: i32) -> (i32, i32) {
    %c0_i32 = arith.constant 0 : i32
    %c0_i32_0 = arith.constant 0 : i32
    %c0_i32_1 = arith.constant 0 : i32
    return %c0_i32, %c0_i32_0 : i32, i32
  }
  func.func @transform_9(%arg0: i32) -> (i32, i32, i32) {
    %c0_i32 = arith.constant 0 : i32
    %c0_i32_0 = arith.constant 0 : i32
    %c0_i32_1 = arith.constant 0 : i32
    return %arg0, %c0_i32, %c0_i32_0 : i32, i32, i32
  }
}

</mosaic_0001>

<llo_original>
// kernel: tpu_custom_call.1
$region0: #{tpu_custom_call.1}
  #allocation0 [shape = 'u32[]', space=smem, size = 0x4, offset = 0x4, fixed_abs, tag = 'smem constant byte address 0x4 - core index']
  #allocation1 [shape = 'u32[144,128]{1,0:T(1,128)}', space=vmem, size = 0x12000, scoped, tag = 'internal scratch']
  %s0 = inlined_call_operand.hbm [shape: f32[2,8,128], index: 0, kind: input, shape index: {}]
  %s1 = inlined_call_operand.hbm [shape: bf16[128,384], index: 1, kind: input, shape index: {}]
  %s2 = inlined_call_operand.hbm [shape: f32[1,384], index: 2, kind: input, shape index: {}]
  %s3 = inlined_call_operand.hbm [shape: bf16[4,32,128], index: 3, kind: input, shape index: {}]
  %s4 = inlined_call_operand.hbm [shape: f32[1,128], index: 4, kind: input, shape index: {}]
  %s5 = inlined_call_operand.hbm [shape: bf16[128,512], index: 5, kind: input, shape index: {}]
  %s6 = inlined_call_operand.hbm [shape: f32[1,512], index: 6, kind: input, shape index: {}]
  %s7 = inlined_call_operand.hbm [shape: bf16[512,128], index: 7, kind: input, shape index: {}]
  %s8 = inlined_call_operand.hbm [shape: f32[1,128], index: 8, kind: input, shape index: {}]
  %s9 = inlined_call_operand.hbm [shape: f32[2,8,128], index: 9, kind: output, shape index: {}]
  %s10 = sld [smem:[#allocation0]]
  $region105: #{tpu_custom_call.1} parent=0
    _
  %s12 = ssub.s32 1, %s10
  %s13 = scalar_select 0, %s12, %s10
  $region1: #{tpu_custom_call.1} parent=0
    #allocation2 [shape = 'u8[8192]{0}', space=vmem, size = 0x2000, scoped, tag = 'input window, operand 0']
    #allocation3 [shape = 's32[2]{0}', space=sflag, size = 0x8, scoped, tag = 'scoped memory for tpu_custom_call.1']
    #allocation4 [shape = 's32[2]{0}', space=sflag, size = 0x8, scoped, tag = 'scoped memory for tpu_custom_call.1']
    #allocation5 [shape = 'u8[98304]{0}', space=vmem, size = 0x18000, scoped, tag = 'input window, operand 1, single buffered']
    #allocation6 [shape = 's32[1]{0}', space=sflag, size = 0x4, scoped, tag = 'scoped memory for tpu_custom_call.1']
    #allocation7 [shape = 'u8[1536]{0}', space=vmem, size = 0x800, scoped, tag = 'input window, operand 2, single buffered']
    #allocation8 [shape = 'u8[32768]{0}', space=vmem, size = 0x8000, scoped, tag = 'input window, operand 3, single buffered']
    #allocation9 [shape = 's32[1]{0}', space=sflag, size = 0x4, scoped, tag = 'scoped memory for tpu_custom_call.1']
    #allocation10 [shape = 'u8[512]{0}', space=vmem, size = 0x400, scoped, tag = 'input window, operand 4, single buffered']
    #allocation11 [shape = 'u8[131072]{0}', space=vmem, size = 0x20000, scoped, tag = 'input window, operand 5, single buffered']
    #allocation12 [shape = 's32[1]{0}', space=sflag, size = 0x4, scoped, tag = 'scoped memory for tpu_custom_call.1']
    #allocation13 [shape = 'u8[2048]{0}', space=vmem, size = 0x800, scoped, tag = 'input window, operand 6, single buffered']
    #allocation14 [shape = 'u8[131072]{0}', space=vmem, size = 0x20000, scoped, tag = 'input window, operand 7, single buffered']
    #allocation15 [shape = 's32[1]{0}', space=sflag, size = 0x4, scoped, tag = 'scoped memory for tpu_custom_call.1']
    #allocation16 [shape = 'u8[512]{0}', space=vmem, size = 0x400, scoped, tag = 'input window, operand 8, single buffered']
    #allocation17 [shape = 'u8[8192]{0}', space=vmem, size = 0x2000, scoped, tag = 'output window, operand 0']
    %14 = vsyncpa [#allocation3], 0
    %s15 = scalar_lea.sflag [#allocation3], 1
    %16 = vsyncpa %s15, 0
    %17 = vsyncpa [#allocation6], 0
    %18 = vsyncpa [#allocation9], 0
    %19 = vsyncpa [#allocation12], 0
    %20 = vsyncpa [#allocation15], 0
    %21 = vsyncpa [#allocation4], 0
    %s22 = scalar_lea.sflag [#allocation4], 1
    %23 = vsyncpa %s22, 0
    loop: start=0, step=1, limit=4
    $region2: #{tpu_custom_call.1} parent=1 // loop_pre_header
      _
    $region3: #{tpu_custom_call.1} parent=1 // loop_header
      %s25 = sphi 0, %s29
      %p26 = scmp.ge.s32.totalorder %s25, 4
      %s35 = sphi 0, %s37
      %s38 = sphi 0, %s35
      %s39 = sphi 0, %s38
      %s55 = sphi 0, %s39
      %s59 = sphi 0, %s59
      %s61 = sphi 0, %s59
      %s62 = sphi 0, %s61
      %s76 = sphi 0, %s62
      %s80 = sphi 0, %s80
      %s82 = sphi 0, %s80
      %s83 = sphi 0, %s82
      %s97 = sphi 0, %s83
      %s101 = sphi 0, %s101
      %s103 = sphi 0, %s101
      %s104 = sphi 0, %s103
      %s118 = sphi 0, %s104
      %s122 = sphi 0, %s122
      %s124 = sphi 0, %s122
      %s125 = sphi 0, %s124
      %s139 = sphi 0, %s125
      %s143 = sphi 0, %s143
      %s145 = sphi 0, %s143
      %s146 = sphi 0, %s145
      %s160 = sphi 0, %s146
      %s164 = sphi 0, %s164
      %s166 = sphi 0, %s164
      %s167 = sphi 0, %s166
      %s181 = sphi 0, %s167
      %s185 = sphi 0, %s185
      %s187 = sphi 0, %s185
      %s188 = sphi 0, %s187
      %s202 = sphi 0, %s188
      %s206 = sphi 0, %s206
      %s208 = sphi 0, %s206
      %s209 = sphi 0, %s208
      %s223 = sphi 0, %s209
      %s229 = sphi 0, %s231
      %s232 = sphi 0, %s229
      %s233 = sphi 0, %s232
      %s249 = sphi 0, %s233
    $region4: #{tpu_custom_call.1} parent=1 // loop_header_branch
      %28 = sbr.rel (%p26) target = $region8
    $region5: #{tpu_custom_call.1} parent=1 // loop_body
      %s30 = ssub.s32 %s25, 1
      %s31 = ssub.s32 %s25, 2
      %s32 = sadd.s32 %s25, 1
      %s33 = ssub.s32 %s25, %s32
      %p34 = scmp.eq.s32.totalorder %s33, 0
      %s36 = sadd.s32 %s35, 1
      %s37 = scalar_select %p34, %s35, %s36
      %p40 = pneg %p34
      %p41 = scmp.eq.s32.totalorder %s25, 1
      %p42 = por %p40, %p41
      %p43 = scmp.ne.s32.totalorder %s35, %s38
      %p44 = scmp.eq.s32.totalorder %s25, 0
      %p45 = por %p43, %p44
      %p46 = scmp.ne.s32.totalorder %s35, %s38
      %p47 = scmp.eq.s32.totalorder %s30, 1
      %p48 = por %p46, %p47
      %p49 = scmp.ne.s32.totalorder %s38, %s39
      %p50 = scmp.eq.s32.totalorder %s30, 0
      %p51 = por %p49, %p50
      %p52 = scmp.ne.s32.totalorder %s38, %s39
      %p53 = scmp.eq.s32.totalorder %s31, 1
      %p54 = por %p52, %p53
      %p56 = scmp.ne.s32.totalorder %s39, %s55
      %p57 = scmp.eq.s32.totalorder %s31, 0
      %p58 = por %p56, %p57
      %s60 = sadd.s32 %s59, 1
      %p63 = scmp.eq.s32.totalorder %s25, 1
      %p64 = scmp.ne.s32.totalorder %s59, %s61
      %p65 = scmp.eq.s32.totalorder %s25, 0
      %p66 = por %p64, %p65
      %p67 = scmp.ne.s32.totalorder %s59, %s61
      %p68 = scmp.eq.s32.totalorder %s30, 1
      %p69 = por %p67, %p68
      %p70 = scmp.ne.s32.totalorder %s61, %s62
      %p71 = scmp.eq.s32.totalorder %s30, 0
      %p72 = por %p70, %p71
      %p73 = scmp.ne.s32.totalorder %s61, %s62
      %p74 = scmp.eq.s32.totalorder %s31, 1
      %p75 = por %p73, %p74
      %p77 = scmp.ne.s32.totalorder %s62, %s76
      %p78 = scmp.eq.s32.totalorder %s31, 0
      %p79 = por %p77, %p78
      %s81 = sadd.s32 %s80, 1
      %p84 = scmp.eq.s32.totalorder %s25, 1
      %p85 = scmp.ne.s32.totalorder %s80, %s82
      %p86 = scmp.eq.s32.totalorder %s25, 0
      %p87 = por %p85, %p86
      %p88 = scmp.ne.s32.totalorder %s80, %s82
      %p89 = scmp.eq.s32.totalorder %s30, 1
      %p90 = por %p88, %p89
      %p91 = scmp.ne.s32.totalorder %s82, %s83
      %p92 = scmp.eq.s32.totalorder %s30, 0
      %p93 = por %p91, %p92
      %p94 = scmp.ne.s32.totalorder %s82, %s83
      %p95 = scmp.eq.s32.totalorder %s31, 1
      %p96 = por %p94, %p95
      %p98 = scmp.ne.s32.totalorder %s83, %s97
      %p99 = scmp.eq.s32.totalorder %s31, 0
      %p100 = por %p98, %p99
      %s102 = sadd.s32 %s101, 1
      %p105 = scmp.eq.s32.totalorder %s25, 1
      %p106 = scmp.ne.s32.totalorder %s101, %s103
      %p107 = scmp.eq.s32.totalorder %s25, 0
      %p108 = por %p106, %p107
      %p109 = scmp.ne.s32.totalorder %s101, %s103
      %p110 = scmp.eq.s32.totalorder %s30, 1
      %p111 = por %p109, %p110
      %p112 = scmp.ne.s32.totalorder %s103, %s104
      %p113 = scmp.eq.s32.totalorder %s30, 0
      %p114 = por %p112, %p113
      %p115 = scmp.ne.s32.totalorder %s103, %s104
      %p116 = scmp.eq.s32.totalorder %s31, 1
      %p117 = por %p115, %p116
      %p119 = scmp.ne.s32.totalorder %s104, %s118
      %p120 = scmp.eq.s32.totalorder %s31, 0
      %p121 = por %p119, %p120
      %s123 = sadd.s32 %s122, 1
      %p126 = scmp.eq.s32.totalorder %s25, 1
      %p127 = scmp.ne.s32.totalorder %s122, %s124
      %p128 = scmp.eq.s32.totalorder %s25, 0
      %p129 = por %p127, %p128
      %p130 = scmp.ne.s32.totalorder %s122, %s124
      %p131 = scmp.eq.s32.totalorder %s30, 1
      %p132 = por %p130, %p131
      %p133 = scmp.ne.s32.totalorder %s124, %s125
      %p134 = scmp.eq.s32.totalorder %s30, 0
      %p135 = por %p133, %p134
      %p136 = scmp.ne.s32.totalorder %s124, %s125
      %p137 = scmp.eq.s32.totalorder %s31, 1
      %p138 = por %p136, %p137
      %p140 = scmp.ne.s32.totalorder %s125, %s139
      %p141 = scmp.eq.s32.totalorder %s31, 0
      %p142 = por %p140, %p141
      %s144 = sadd.s32 %s143, 1
      %p147 = scmp.eq.s32.totalorder %s25, 1
      %p148 = scmp.ne.s32.totalorder %s143, %s145
      %p149 = scmp.eq.s32.totalorder %s25, 0
      %p150 = por %p148, %p149
      %p151 = scmp.ne.s32.totalorder %s143, %s145
      %p152 = scmp.eq.s32.totalorder %s30, 1
      %p153 = por %p151, %p152
      %p154 = scmp.ne.s32.totalorder %s145, %s146
      %p155 = scmp.eq.s32.totalorder %s30, 0
      %p156 = por %p154, %p155
      %p157 = scmp.ne.s32.totalorder %s145, %s146
      %p158 = scmp.eq.s32.totalorder %s31, 1
      %p159 = por %p157, %p158
      %p161 = scmp.ne.s32.totalorder %s146, %s160
      %p162 = scmp.eq.s32.totalorder %s31, 0
      %p163 = por %p161, %p162
      %s165 = sadd.s32 %s164, 1
      %p168 = scmp.eq.s32.totalorder %s25, 1
      %p169 = scmp.ne.s32.totalorder %s164, %s166
      %p170 = scmp.eq.s32.totalorder %s25, 0
      %p171 = por %p169, %p170
      %p172 = scmp.ne.s32.totalorder %s164, %s166
      %p173 = scmp.eq.s32.totalorder %s30, 1
      %p174 = por %p172, %p173
      %p175 = scmp.ne.s32.totalorder %s166, %s167
      %p176 = scmp.eq.s32.totalorder %s30, 0
      %p177 = por %p175, %p176
      %p178 = scmp.ne.s32.totalorder %s166, %s167
      %p179 = scmp.eq.s32.totalorder %s31, 1
      %p180 = por %p178, %p179
      %p182 = scmp.ne.s32.totalorder %s167, %s181
      %p183 = scmp.eq.s32.totalorder %s31, 0
      %p184 = por %p182, %p183
      %s186 = sadd.s32 %s185, 1
      %p189 = scmp.eq.s32.totalorder %s25, 1
      %p190 = scmp.ne.s32.totalorder %s185, %s187
      %p191 = scmp.eq.s32.totalorder %s25, 0
      %p192 = por %p190, %p191
      %p193 = scmp.ne.s32.totalorder %s185, %s187
      %p194 = scmp.eq.s32.totalorder %s30, 1
      %p195 = por %p193, %p194
      %p196 = scmp.ne.s32.totalorder %s187, %s188
      %p197 = scmp.eq.s32.totalorder %s30, 0
      %p198 = por %p196, %p197
      %p199 = scmp.ne.s32.totalorder %s187, %s188
      %p200 = scmp.eq.s32.totalorder %s31, 1
      %p201 = por %p199, %p200
      %p203 = scmp.ne.s32.totalorder %s188, %s202
      %p204 = scmp.eq.s32.totalorder %s31, 0
      %p205 = por %p203, %p204
      %s207 = sadd.s32 %s206, 1
      %p210 = scmp.eq.s32.totalorder %s25, 1
      %p211 = scmp.ne.s32.totalorder %s206, %s208
      %p212 = scmp.eq.s32.totalorder %s25, 0
      %p213 = por %p211, %p212
      %p214 = scmp.ne.s32.totalorder %s206, %s208
      %p215 = scmp.eq.s32.totalorder %s30, 1
      %p216 = por %p214, %p215
      %p217 = scmp.ne.s32.totalorder %s208, %s209
      %p218 = scmp.eq.s32.totalorder %s30, 0
      %p219 = por %p217, %p218
      %p220 = scmp.ne.s32.totalorder %s208, %s209
      %p221 = scmp.eq.s32.totalorder %s31, 1
      %p222 = por %p220, %p221
      %p224 = scmp.ne.s32.totalorder %s209, %s223
      %p225 = scmp.eq.s32.totalorder %s31, 0
      %p226 = por %p224, %p225
      %s227 = ssub.s32 %s25, %s32
      %p228 = scmp.eq.s32.totalorder %s227, 0
      %s230 = sadd.s32 %s229, 1
      %s231 = scalar_select %p228, %s229, %s230
      %p234 = pneg %p228
      %p235 = scmp.eq.s32.totalorder %s25, 1
      %p236 = por %p234, %p235
      %p237 = scmp.ne.s32.totalorder %s229, %s232
      %p238 = scmp.eq.s32.totalorder %s25, 0
      %p239 = por %p237, %p238
      %p240 = scmp.ne.s32.totalorder %s229, %s232
      %p241 = scmp.eq.s32.totalorder %s30, 1
      %p242 = por %p240, %p241
      %p243 = scmp.ne.s32.totalorder %s232, %s233
      %p244 = scmp.eq.s32.totalorder %s30, 0
      %p245 = por %p243, %p244
      %p246 = scmp.ne.s32.totalorder %s232, %s233
      %p247 = scmp.eq.s32.totalorder %s31, 1
      %p248 = por %p246, %p247
      %p250 = scmp.ne.s32.totalorder %s233, %s249
      %p251 = scmp.eq.s32.totalorder %s31, 0
      %p252 = por %p250, %p251
      %p253 = scmp.le.s32.totalorder 1, %s25
      %p254 = scmp.lt.s32.totalorder %s25, 3
      %p255 = pnand %p253, %p254
      %p256 = pneg %p255
      // Predicated region
      $region9: #{tpu_custom_call.1} parent=5 // pred_check
        _
      $region10: #{tpu_custom_call.1} parent=5 // pred_check_branch
        %258 = sbr.rel (%p255) target = $region12
      $region11: #{tpu_custom_call.1} parent=5 // pred_region
        %s259 = ssub.s32 %s25, 1
        // Predicated region
        $region13: #{tpu_custom_call.1} parent=11 // pred_check
          %p260 = pneg %p72
        $region14: #{tpu_custom_call.1} parent=11 // pred_check_branch
          %262 = sbr.rel (%p260) target = $region16
        $region15: #{tpu_custom_call.1} parent=11 // pred_region
          %s264 = ssub.s32 3072, 3072
          %265 = vsyncadd [#allocation6], %s264
          %s266 = sshll.u32 [#allocation5], 4
          %s267 = int_to_ptr.vmem [resolvable:$true] %s266
          %272 = dma.hbm_to_vmem [thread:$0]  %s1, 3072, %s267, [#allocation6], 192, 192, 12
        $region16: #{tpu_custom_call.1} parent=11 // pred_fallthru
          _
        // Predicated region
        $region17: #{tpu_custom_call.1} parent=11 // pred_check
          %p273 = pneg %p93
        $region18: #{tpu_custom_call.1} parent=11 // pred_check_branch
          %275 = sbr.rel (%p273) target = $region20
        $region19: #{tpu_custom_call.1} parent=11 // pred_region
          %s277 = ssub.s32 48, 48
          %278 = vsyncadd [#allocation6], %s277
          %s280 = sshll.u32 [#allocation7], 4
          %s281 = int_to_ptr.vmem [resolvable:$true] %s280
          %283 = dma.hbm_to_vmem [thread:$0]  %s2, 48, %s281, [#allocation6]
        $region20: #{tpu_custom_call.1} parent=11 // pred_fallthru
          _
        // Predicated region
        $region21: #{tpu_custom_call.1} parent=11 // pred_check
          %p284 = pneg %p114
        $region22: #{tpu_custom_call.1} parent=11 // pred_check_branch
          %286 = sbr.rel (%p284) target = $region24
        $region23: #{tpu_custom_call.1} parent=11 // pred_region
          %s288 = ssub.s32 1024, 1024
          %289 = vsyncadd [#allocation9], %s288
          %s290 = sshll.u32 [#allocation8], 4
          %s291 = int_to_ptr.vmem [resolvable:$true] %s290
          %296 = dma.hbm_to_vmem [thread:$0]  %s3, 1024, %s291, [#allocation9], 64, 64, 4
        $region24: #{tpu_custom_call.1} parent=11 // pred_fallthru
          _
        // Predicated region
        $region25: #{tpu_custom_call.1} parent=11 // pred_check
          %p297 = pneg %p135
        $region26: #{tpu_custom_call.1} parent=11 // pred_check_branch
          %299 = sbr.rel (%p297) target = $region28
        $region27: #{tpu_custom_call.1} parent=11 // pred_region
          %s301 = ssub.s32 16, 16
          %302 = vsyncadd [#allocation9], %s301
          %s304 = sshll.u32 [#allocation10], 4
          %s305 = int_to_ptr.vmem [resolvable:$true] %s304
          %307 = dma.hbm_to_vmem [thread:$0]  %s4, 16, %s305, [#allocation9]
        $region28: #{tpu_custom_call.1} parent=11 // pred_fallthru
          _
        // Predicated region
        $region29: #{tpu_custom_call.1} parent=11 // pred_check
          %p308 = pneg %p156
        $region30: #{tpu_custom_call.1} parent=11 // pred_check_branch
          %310 = sbr.rel (%p308) target = $region32
        $region31: #{tpu_custom_call.1} parent=11 // pred_region
          %s312 = ssub.s32 4096, 4096
          %313 = vsyncadd [#allocation12], %s312
          %s314 = sshll.u32 [#allocation11], 4
          %s315 = int_to_ptr.vmem [resolvable:$true] %s314
          %320 = dma.hbm_to_vmem [thread:$0]  %s5, 4096, %s315, [#allocation12], 256, 256, 16
        $region32: #{tpu_custom_call.1} parent=11 // pred_fallthru
          _
        // Predicated region
        $region33: #{tpu_custom_call.1} parent=11 // pred_check
          %p321 = pneg %p177
        $region34: #{tpu_custom_call.1} parent=11 // pred_check_branch
          %323 = sbr.rel (%p321) target = $region36
        $region35: #{tpu_custom_call.1} parent=11 // pred_region
          %s325 = ssub.s32 64, 64
          %326 = vsyncadd [#allocation12], %s325
          %s328 = sshll.u32 [#allocation13], 4
          %s329 = int_to_ptr.vmem [resolvable:$true] %s328
          %331 = dma.hbm_to_vmem [thread:$0]  %s6, 64, %s329, [#allocation12]
        $region36: #{tpu_custom_call.1} parent=11 // pred_fallthru
          _
        // Predicated region
        $region37: #{tpu_custom_call.1} parent=11 // pred_check
          %p332 = pneg %p198
        $region38: #{tpu_custom_call.1} parent=11 // pred_check_branch
          %334 = sbr.rel (%p332) target = $region40
        $region39: #{tpu_custom_call.1} parent=11 // pred_region
          %s336 = ssub.s32 4096, 4096
          %337 = vsyncadd [#allocation15], %s336
          %s338 = sshll.u32 [#allocation14], 4
          %s339 = int_to_ptr.vmem [resolvable:$true] %s338
          %344 = dma.hbm_to_vmem [thread:$0]  %s7, 4096, %s339, [#allocation15], 64, 64, 4
        $region40: #{tpu_custom_call.1} parent=11 // pred_fallthru
          _
        // Predicated region
        $region41: #{tpu_custom_call.1} parent=11 // pred_check
          %p345 = pneg %p219
        $region42: #{tpu_custom_call.1} parent=11 // pred_check_branch
          %347 = sbr.rel (%p345) target = $region44
        $region43: #{tpu_custom_call.1} parent=11 // pred_region
          %s349 = ssub.s32 16, 16
          %350 = vsyncadd [#allocation15], %s349
          %s352 = sshll.u32 [#allocation16], 4
          %s353 = int_to_ptr.vmem [resolvable:$true] %s352
          %355 = dma.hbm_to_vmem [thread:$0]  %s8, 16, %s353, [#allocation15]
        $region44: #{tpu_custom_call.1} parent=11 // pred_fallthru
          _
      $region12: #{tpu_custom_call.1} parent=5 // pred_fallthru
        _
      %p356 = scmp.lt.s32.totalorder %s25, 2
      // Predicated region
      $region45: #{tpu_custom_call.1} parent=5 // pred_check
        %p357 = pneg %p356
      $region46: #{tpu_custom_call.1} parent=5 // pred_check_branch
        %359 = sbr.rel (%p357) target = $region48
      $region47: #{tpu_custom_call.1} parent=5 // pred_region
        // Predicated region
        $region49: #{tpu_custom_call.1} parent=47 // pred_check
          %p360 = pneg %p45
        $region50: #{tpu_custom_call.1} parent=47 // pred_check_branch
          %362 = sbr.rel (%p360) target = $region52
        $region51: #{tpu_custom_call.1} parent=47 // pred_region
          %s363 = sand.u32 %s35, 1
          %s364 = scalar_lea.sflag [#allocation3], %s363
          %s365 = sand.u32 %s35, 1
          %s366 = smul.addr %s365, 8
          %s367 = scalar_lea.vmem [#allocation2], %s366
          %s369 = ssub.s32 128, 128
          %370 = vsyncadd %s364, %s369
          %s371 = smul.addr %s25, 128
          %s372 = scalar_lea.hbm %s0, %s371
          %s374 = sshll.u32 %s367, 4
          %s375 = int_to_ptr.vmem [resolvable:$true] %s374
          %377 = dma.hbm_to_vmem [thread:$0]  %s372, 128, %s375, %s364
        $region52: #{tpu_custom_call.1} parent=47 // pred_fallthru
          _
      $region48: #{tpu_custom_call.1} parent=5 // pred_fallthru
        _
      %p378 = scmp.le.s32.totalorder 1, %s25
      %p379 = scmp.lt.s32.totalorder %s25, 3
      %p380 = pnand %p378, %p379
      %p381 = pneg %p380
      // Predicated region
      $region53: #{tpu_custom_call.1} parent=5 // pred_check
        _
      $region54: #{tpu_custom_call.1} parent=5 // pred_check_branch
        %383 = sbr.rel (%p380) target = $region56
      $region55: #{tpu_custom_call.1} parent=5 // pred_region
        %s384 = ssub.s32 %s25, 1
        %s385 = sand.u32 %s38, 1
        %s386 = scalar_lea.sflag [#allocation3], %s385
        %s387 = sand.u32 %s38, 1
        %s388 = smul.addr %s387, 8
        %s389 = scalar_lea.vmem [#allocation2], %s388
        // Predicated region
        $region57: #{tpu_custom_call.1} parent=55 // pred_check
          %p390 = pneg %p51
        $region58: #{tpu_custom_call.1} parent=55 // pred_check_branch
          %392 = sbr.rel (%p390) target = $region60
        $region59: #{tpu_custom_call.1} parent=55 // pred_region
          %393 = dma.done %s386, 128
        $region60: #{tpu_custom_call.1} parent=55 // pred_fallthru
          _
        // Predicated region
        $region61: #{tpu_custom_call.1} parent=55 // pred_check
          %p394 = pneg %p72
        $region62: #{tpu_custom_call.1} parent=55 // pred_check_branch
          %396 = sbr.rel (%p394) target = $region64
        $region63: #{tpu_custom_call.1} parent=55 // pred_region
          %397 = dma.done [#allocation6], 3072
        $region64: #{tpu_custom_call.1} parent=55 // pred_fallthru
          _
        // Predicated region
        $region65: #{tpu_custom_call.1} parent=55 // pred_check
          %p398 = pneg %p93
        $region66: #{tpu_custom_call.1} parent=55 // pred_check_branch
          %400 = sbr.rel (%p398) target = $region68
        $region67: #{tpu_custom_call.1} parent=55 // pred_region
          %401 = dma.done [#allocation6], 48
        $region68: #{tpu_custom_call.1} parent=55 // pred_fallthru
          _
        // Predicated region
        $region69: #{tpu_custom_call.1} parent=55 // pred_check
          %p402 = pneg %p114
        $region70: #{tpu_custom_call.1} parent=55 // pred_check_branch
          %404 = sbr.rel (%p402) target = $region72
        $region71: #{tpu_custom_call.1} parent=55 // pred_region
          %405 = dma.done [#allocation9], 1024
        $region72: #{tpu_custom_call.1} parent=55 // pred_fallthru
          _
        // Predicated region
        $region73: #{tpu_custom_call.1} parent=55 // pred_check
          %p406 = pneg %p135
        $region74: #{tpu_custom_call.1} parent=55 // pred_check_branch
          %408 = sbr.rel (%p406) target = $region76
        $region75: #{tpu_custom_call.1} parent=55 // pred_region
          %409 = dma.done [#allocation9], 16
        $region76: #{tpu_custom_call.1} parent=55 // pred_fallthru
          _
        // Predicated region
        $region77: #{tpu_custom_call.1} parent=55 // pred_check
          %p410 = pneg %p156
        $region78: #{tpu_custom_call.1} parent=55 // pred_check_branch
          %412 = sbr.rel (%p410) target = $region80
        $region79: #{tpu_custom_call.1} parent=55 // pred_region
          %413 = dma.done [#allocation12], 4096
        $region80: #{tpu_custom_call.1} parent=55 // pred_fallthru
          _
        // Predicated region
        $region81: #{tpu_custom_call.1} parent=55 // pred_check
          %p414 = pneg %p177
        $region82: #{tpu_custom_call.1} parent=55 // pred_check_branch
          %416 = sbr.rel (%p414) target = $region84
        $region83: #{tpu_custom_call.1} parent=55 // pred_region
          %417 = dma.done [#allocation12], 64
        $region84: #{tpu_custom_call.1} parent=55 // pred_fallthru
          _
        // Predicated region
        $region85: #{tpu_custom_call.1} parent=55 // pred_check
          %p418 = pneg %p198
        $region86: #{tpu_custom_call.1} parent=55 // pred_check_branch
          %420 = sbr.rel (%p418) target = $region88
        $region87: #{tpu_custom_call.1} parent=55 // pred_region
          %421 = dma.done [#allocation15], 4096
        $region88: #{tpu_custom_call.1} parent=55 // pred_fallthru
          _
        // Predicated region
        $region89: #{tpu_custom_call.1} parent=55 // pred_check
          %p422 = pneg %p219
        $region90: #{tpu_custom_call.1} parent=55 // pred_check_branch
          %424 = sbr.rel (%p422) target = $region92
        $region91: #{tpu_custom_call.1} parent=55 // pred_region
          %425 = dma.done [#allocation15], 16
        $region92: #{tpu_custom_call.1} parent=55 // pred_fallthru
          _
        %s426 = sand.u32 %s38, 1
        %s427 = scalar_lea.sflag [#allocation3], %s426
        %s428 = sand.u32 %s38, 1
        %s429 = smul.addr %s428, 8
        %s430 = scalar_lea.vmem [#allocation2], %s429
        %p431 = pneg %p51
        %p432 = pneg %p48
        %p433 = pneg %p72
        %p434 = pneg %p69
        %p435 = pneg %p93
        %p436 = pneg %p90
        %p437 = pneg %p114
        %p438 = pneg %p111
        %p439 = pneg %p135
        %p440 = pneg %p132
        %p441 = pneg %p156
        %p442 = pneg %p153
        %p443 = pneg %p177
        %p444 = pneg %p174
        %p445 = pneg %p198
        %p446 = pneg %p195
        %p447 = pneg %p219
        %p448 = pneg %p216
        %p449 = pneg %p245
        %p450 = pneg %p242
        %s451 = sand.u32 %s232, 1
        %s452 = scalar_lea.sflag [#allocation4], %s451
        %s453 = sand.u32 %s232, 1
        %s454 = smul.addr %s453, 8
        %s455 = scalar_lea.vmem [#allocation17], %s454
        %v457 = vld [vmem:[%s389] sm:$0xff]
        %458 = vadd.xlane.f32.xlu0 %v457
        %v459 = vpop.xlane.xlu0 %458
        %v460 = vrcp.pop 128.0
        %v461 = vmul.f32 %v459, %v460
        %v462 = vsub.f32 %v457, %v461
        %v463 = vmul.f32 %v462, %v462
        %464 = vadd.xlane.f32.xlu0 %v463
        %v465 = vpop.xlane.xlu0 %464
        %v466 = vmul.f32 %v465, %v460
        %v467 = vadd.f32 %v466, 1e-05
        %v468 = vrsqrt.pop %v467
        %v469 = vmul.f32 %v462, %v468
        %v470 = vpack.c.bf16 %v469, %v469
        %v471 = vld [vmem:[#allocation5] sm:$0xff]
        %v472 = vld [vmem:[#allocation5 + $0x8] sm:$0xf]
        %v473 = vld [vmem:[#allocation5 + $0xc] sm:$0xff]
        %v474 = vld [vmem:[#allocation5 + $0x14] sm:$0xf]
        %v475 = vld [vmem:[#allocation5 + $0x18] sm:$0xff]
        %v476 = vld [vmem:[#allocation5 + $0x20] sm:$0xf]
        %v477 = vld [vmem:[#allocation5 + $0x24] sm:$0xff]
        %v478 = vld [vmem:[#allocation5 + $0x2c] sm:$0xf]
        %v479 = vld [vmem:[#allocation5 + $0x30] sm:$0xff]
        %v480 = vld [vmem:[#allocation5 + $0x38] sm:$0xf]
        %v481 = vld [vmem:[#allocation5 + $0x3c] sm:$0xff]
        %v482 = vld [vmem:[#allocation5 + $0x44] sm:$0xf]
        %v483 = vld [vmem:[#allocation5 + $0x48] sm:$0xff]
        %v484 = vld [vmem:[#allocation5 + $0x50] sm:$0xf]
        %v485 = vld [vmem:[#allocation5 + $0x54] sm:$0xff]
        %v486 = vld [vmem:[#allocation5 + $0x5c] sm:$0xf]
        %v487 = vld [vmem:[#allocation5 + $0x60] sm:$0xff]
        %v488 = vld [vmem:[#allocation5 + $0x68] sm:$0xf]
        %v489 = vld [vmem:[#allocation5 + $0x6c] sm:$0xff]
        %v490 = vld [vmem:[#allocation5 + $0x74] sm:$0xf]
        %v491 = vld [vmem:[#allocation5 + $0x78] sm:$0xff]
        %v492 = vld [vmem:[#allocation5 + $0x80] sm:$0xf]
        %v493 = vld [vmem:[#allocation5 + $0x84] sm:$0xff]
        %v494 = vld [vmem:[#allocation5 + $0x8c] sm:$0xf]
        %v495 = vld [vmem:[#allocation5 + $0x90] sm:$0xff]
        %v496 = vld [vmem:[#allocation5 + $0x98] sm:$0xf]
        %v497 = vld [vmem:[#allocation5 + $0x9c] sm:$0xff]
        %v498 = vld [vmem:[#allocation5 + $0xa4] sm:$0xf]
        %v499 = vld [vmem:[#allocation5 + $0xa8] sm:$0xff]
        %v500 = vld [vmem:[#allocation5 + $0xb0] sm:$0xf]
        %v501 = vld [vmem:[#allocation5 + $0xb4] sm:$0xff]
        %v502 = vld [vmem:[#allocation5 + $0xbc] sm:$0xf]
        %v503 = vld [vmem:[#allocation7] sm:$0x7]
        %v505 = vlaneseq
        %v506 = vshrl.u32 %v505, 7
        %v507 = vsub.s32 0, %v506
        %v508 = vrot.slane %v503, %v507
        %v509 = vlaneseq
        %v510 = vshrl.u32 %v509, 7
        %v511 = vsub.s32 1, %v510
        %v512 = vrot.slane %v503, %v511
        %v513 = vlaneseq
        %v514 = vshrl.u32 %v513, 7
        %v515 = vsub.s32 2, %v514
        %v516 = vrot.slane %v503, %v515
        %v552 = vunpack.c.l.b16 %v471
        %v553 = vunpack.c.h.b16 %v471
        %v554 = vunpack.c.l.b16 %v472
        %v555 = vunpack.c.l.b16 %v473
        %v556 = vunpack.c.h.b16 %v473
        %v557 = vunpack.c.l.b16 %v474
        %v558 = vunpack.c.l.b16 %v475
        %v559 = vunpack.c.h.b16 %v475
        %v560 = vunpack.c.l.b16 %v476
        %v561 = vunpack.c.l.b16 %v477
        %v562 = vunpack.c.h.b16 %v477
        %v563 = vunpack.c.l.b16 %v478
        %v564 = vunpack.c.l.b16 %v479
        %v565 = vunpack.c.h.b16 %v479
        %v566 = vunpack.c.l.b16 %v480
        %v567 = vunpack.c.l.b16 %v481
        %v568 = vunpack.c.h.b16 %v481
        %v569 = vunpack.c.l.b16 %v482
        %v570 = vunpack.c.l.b16 %v483
        %v571 = vunpack.c.h.b16 %v483
        %v572 = vunpack.c.l.b16 %v484
        %v573 = vunpack.c.l.b16 %v485
        %v574 = vunpack.c.h.b16 %v485
        %v575 = vunpack.c.l.b16 %v486
        %v576 = vunpack.c.l.b16 %v487
        %v577 = vunpack.c.h.b16 %v487
        %v578 = vunpack.c.l.b16 %v488
        %v579 = vunpack.c.l.b16 %v489
        %v580 = vunpack.c.h.b16 %v489
        %v581 = vunpack.c.l.b16 %v490
        %v582 = vunpack.c.l.b16 %v491
        %v583 = vunpack.c.h.b16 %v491
        %v584 = vunpack.c.l.b16 %v492
        %v585 = vunpack.c.l.b16 %v493
        %v586 = vunpack.c.h.b16 %v493
        %v587 = vunpack.c.l.b16 %v494
        %v588 = vunpack.c.l.b16 %v495
        %v589 = vunpack.c.h.b16 %v495
        %v590 = vunpack.c.l.b16 %v496
        %v591 = vunpack.c.l.b16 %v497
        %v592 = vunpack.c.h.b16 %v497
        %v593 = vunpack.c.l.b16 %v498
        %v594 = vunpack.c.l.b16 %v499
        %v595 = vunpack.c.h.b16 %v499
        %v596 = vunpack.c.l.b16 %v500
        %v597 = vunpack.c.l.b16 %v501
        %v598 = vunpack.c.h.b16 %v501
        %v599 = vunpack.c.l.b16 %v502
        %v600 = vpack.c.b16 %v555, %v552
        %v601 = vpack.c.b16 %v556, %v553
        %v602 = vpack.c.b16 %v557, %v554
        %v603 = vpack.c.b16 %v561, %v558
        %v604 = vpack.c.b16 %v562, %v559
        %v605 = vpack.c.b16 %v563, %v560
        %v606 = vpack.c.b16 %v567, %v564
        %v607 = vpack.c.b16 %v568, %v565
        %v608 = vpack.c.b16 %v569, %v566
        %v609 = vpack.c.b16 %v573, %v570
        %v610 = vpack.c.b16 %v574, %v571
        %v611 = vpack.c.b16 %v575, %v572
        %v612 = vpack.c.b16 %v579, %v576
        %v613 = vpack.c.b16 %v580, %v577
        %v614 = vpack.c.b16 %v581, %v578
        %v615 = vpack.c.b16 %v585, %v582
        %v616 = vpack.c.b16 %v586, %v583
        %v617 = vpack.c.b16 %v587, %v584
        %v618 = vpack.c.b16 %v591, %v588
        %v619 = vpack.c.b16 %v592, %v589
        %v620 = vpack.c.b16 %v593, %v590
        %v621 = vpack.c.b16 %v597, %v594
        %v622 = vpack.c.b16 %v598, %v595
        %v623 = vpack.c.b16 %v599, %v596
        %648 = vmatprep.subr.bf16.mxu0 %v601
        %649 = vmatpush1.bf16.msra.mxu0 %v600
        %650 = vmatprep.subr.bf16.mxu0 %v604
        %651 = vmatpush1.bf16.msra.mxu0 %v603
        %652 = vmatprep.subr.bf16.mxu0 %v607
        %653 = vmatpush1.bf16.msra.mxu0 %v606
        %654 = vmatprep.subr.bf16.mxu0 %v610
        %655 = vmatpush1.bf16.msra.mxu0 %v609
        %656 = vmatprep.subr.bf16.mxu0 %v613
        %657 = vmatpush1.bf16.msra.mxu0 %v612
        %658 = vmatprep.subr.bf16.mxu0 %v616
        %659 = vmatpush1.bf16.msra.mxu0 %v615
        %660 = vmatprep.subr.bf16.mxu0 %v619
        %661 = vmatpush1.bf16.msra.mxu0 %v618
        %662 = vmatprep.subr.bf16.mxu0 %v622
        %663 = vmatpush1.bf16.msra.mxu0 %v621
        %664 = vmatprep.subr.bf16.mxu0 0
        %665 = vmatpush1.bf16.msra.mxu0 0
        %666 = vmatprep.subr.bf16.mxu0 0
        %667 = vmatpush1.bf16.msra.mxu0 0
        %668 = vmatprep.subr.bf16.mxu0 0
        %669 = vmatpush1.bf16.msra.mxu0 0
        %670 = vmatprep.subr.bf16.mxu0 0
        %671 = vmatpush1.bf16.msra.mxu0 0
        %672 = vmatprep.subr.bf16.mxu0 0
        %673 = vmatpush1.bf16.msra.mxu0 0
        %674 = vmatprep.subr.bf16.mxu0 0
        %675 = vmatpush1.bf16.msra.mxu0 0
        %676 = vmatprep.subr.bf16.mxu0 0
        %677 = vmatpush1.bf16.msra.mxu0 0
        %678 = vmatprep.subr.bf16.mxu0 0
        %679 = vmatpush1.bf16.msra.mxu0 0
        %680 = vmatprep.mubr.bf16.mxu0 0
        %681 = vmatmul.mubr.bf16.gmra.mrb[0].mxu0 %v470
        %v682 = vpop.f32.mrb[0].mxu0
        %v683 = vadd.f32 %v508, %v682
        %v684 = vpop.f32.mrb[0].mxu0
        %v685 = vadd.f32 %v512, %v684
        %v686 = vpop.f32.mrb[0].mxu0
        %v687 = vpop.f32.mrb[0].mxu0
        %688 = vdwg.mxu0
        %689 = vmatprep.subr.bf16.mxu0 0
        %690 = vmatpush1.bf16.msra.mxu0 %v602
        %691 = vmatprep.subr.bf16.mxu0 0
        %692 = vmatpush1.bf16.msra.mxu0 %v605
        %693 = vmatprep.subr.bf16.mxu0 0
        %694 = vmatpush1.bf16.msra.mxu0 %v608
        %695 = vmatprep.subr.bf16.mxu0 0
        %696 = vmatpush1.bf16.msra.mxu0 %v611
        %697 = vmatprep.subr.bf16.mxu0 0
        %698 = vmatpush1.bf16.msra.mxu0 %v614
        %699 = vmatprep.subr.bf16.mxu0 0
        %700 = vmatpush1.bf16.msra.mxu0 %v617
        %701 = vmatprep.subr.bf16.mxu0 0
        %702 = vmatpush1.bf16.msra.mxu0 %v620
        %703 = vmatprep.subr.bf16.mxu0 0
        %704 = vmatpush1.bf16.msra.mxu0 %v623
        %705 = vmatprep.subr.bf16.mxu0 0
        %706 = vmatpush1.bf16.msra.mxu0 0
        %707 = vmatprep.subr.bf16.mxu0 0
        %708 = vmatpush1.bf16.msra.mxu0 0
        %709 = vmatprep.subr.bf16.mxu0 0
        %710 = vmatpush1.bf16.msra.mxu0 0
        %711 = vmatprep.subr.bf16.mxu0 0
        %712 = vmatpush1.bf16.msra.mxu0 0
        %713 = vmatprep.subr.bf16.mxu0 0
        %714 = vmatpush1.bf16.msra.mxu0 0
        %715 = vmatprep.subr.bf16.mxu0 0
        %716 = vmatpush1.bf16.msra.mxu0 0
        %717 = vmatprep.subr.bf16.mxu0 0
        %718 = vmatpush1.bf16.msra.mxu0 0
        %719 = vmatprep.subr.bf16.mxu0 0
        %720 = vmatpush1.bf16.msra.mxu0 0
        %721 = vmatprep.mubr.bf16.mxu0 0
        %722 = vmatmul.mubr.bf16.gmra.mrb[0].mxu0 %v470
        %v723 = vpop.f32.mrb[0].mxu0
        %v724 = vadd.f32 %v516, %v723
        %v725 = vpop.f32.mrb[0].mxu0
        %v726 = vpop.f32.mrb[0].mxu0
        %v727 = vpop.f32.mrb[0].mxu0
        %728 = vdwg.mxu0
        %730 = vrot.lane.b32.xlu0 %v683, 96
        %v731 = vpop.permute.xlu0 %730
        %733 = vrot.lane.b32.xlu0 %v683, 64
        %v734 = vpop.permute.xlu0 %733
        %736 = vrot.lane.b32.xlu0 %v683, 32
        %v737 = vpop.permute.xlu0 %736
        %v739 = vpack.c.bf16 %v683, %v683
        %v740 = vpack.c.bf16 %v731, %v731
        %v741 = vpack.c.bf16 %v734, %v734
        %v742 = vpack.c.bf16 %v737, %v737
        %744 = vrot.lane.b32.xlu0 %v685, 96
        %v745 = vpop.permute.xlu0 %744
        %747 = vrot.lane.b32.xlu0 %v685, 64
        %v748 = vpop.permute.xlu0 %747
        %750 = vrot.lane.b32.xlu0 %v685, 32
        %v751 = vpop.permute.xlu0 %750
        %v753 = vpack.c.bf16 %v685, %v685
        %v754 = vpack.c.bf16 %v745, %v745
        %v755 = vpack.c.bf16 %v748, %v748
        %v756 = vpack.c.bf16 %v751, %v751
        %758 = vrot.lane.b32.xlu0 %v724, 96
        %v759 = vpop.permute.xlu0 %758
        %761 = vrot.lane.b32.xlu0 %v724, 64
        %v762 = vpop.permute.xlu0 %761
        %764 = vrot.lane.b32.xlu0 %v724, 32
        %v765 = vpop.permute.xlu0 %764
        %v767 = vpack.c.bf16 %v724, %v724
        %v768 = vpack.c.bf16 %v759, %v759
        %v769 = vpack.c.bf16 %v762, %v762
        %v770 = vpack.c.bf16 %v765, %v765
        %vm771 = vcmask 261120
        %v773 = vsel %vm771, %v739, 0
        %v776 = vsel %vm771, %v753, 0
        %778 = vmatprep.subr.bf16.mxu0 0
        %779 = vmatpush1.bf16.xpose.msra.mxu0 %v776
        %780 = vmatprep.subr.bf16.mxu0 0
        %781 = vmatpush1.bf16.xpose.msra.mxu0 0
        %782 = vmatprep.subr.bf16.mxu0 0
        %783 = vmatpush1.bf16.xpose.msra.mxu0 0
        %784 = vmatprep.subr.bf16.mxu0 0
        %785 = vmatpush1.bf16.xpose.msra.mxu0 0
        %786 = vmatprep.subr.bf16.mxu0 0
        %787 = vmatpush1.bf16.xpose.msra.mxu0 0
        %788 = vmatprep.subr.bf16.mxu0 0
        %789 = vmatpush1.bf16.xpose.msra.mxu0 0
        %790 = vmatprep.subr.bf16.mxu0 0
        %791 = vmatpush1.bf16.xpose.msra.mxu0 0
        %792 = vmatprep.subr.bf16.mxu0 0
        %793 = vmatpush1.bf16.xpose.msra.mxu0 0
        %794 = vmatprep.subr.bf16.mxu0 0
        %795 = vmatpush1.bf16.xpose.msra.mxu0 0
        %796 = vmatprep.subr.bf16.mxu0 0
        %797 = vmatpush1.bf16.xpose.msra.mxu0 0
        %798 = vmatprep.subr.bf16.mxu0 0
        %799 = vmatpush1.bf16.xpose.msra.mxu0 0
        %800 = vmatprep.subr.bf16.mxu0 0
        %801 = vmatpush1.bf16.xpose.msra.mxu0 0
        %802 = vmatprep.subr.bf16.mxu0 0
        %803 = vmatpush1.bf16.xpose.msra.mxu0 0
        %804 = vmatprep.subr.bf16.mxu0 0
        %805 = vmatpush1.bf16.xpose.msra.mxu0 0
        %806 = vmatprep.subr.bf16.mxu0 0
        %807 = vmatpush1.bf16.xpose.msra.mxu0 0
        %808 = vmatprep.subr.bf16.mxu0 0
        %809 = vmatpush1.bf16.xpose.msra.mxu0 0
        %810 = vmatprep.mubr.bf16.mxu0 0
        %811 = vmatmul.mubr.bf16.gmra.mrb[0].mxu0 %v773
        %v812 = vpop.f32.mrb[0].mxu0
        %v813 = vadd.f32 0.0, %v812
        %v814 = vpop.f32.mrb[0].mxu0
        %v815 = vpop.f32.mrb[0].mxu0
        %v816 = vpop.f32.mrb[0].mxu0
        %817 = vdwg.mxu0
        %v819 = vsel %vm771, %v740, 0
        %v822 = vsel %vm771, %v754, 0
        %824 = vmatprep.subr.bf16.mxu0 0
        %825 = vmatpush1.bf16.xpose.msra.mxu0 %v822
        %826 = vmatprep.subr.bf16.mxu0 0
        %827 = vmatpush1.bf16.xpose.msra.mxu0 0
        %828 = vmatprep.subr.bf16.mxu0 0
        %829 = vmatpush1.bf16.xpose.msra.mxu0 0
        %830 = vmatprep.subr.bf16.mxu0 0
        %831 = vmatpush1.bf16.xpose.msra.mxu0 0
        %832 = vmatprep.subr.bf16.mxu0 0
        %833 = vmatpush1.bf16.xpose.msra.mxu0 0
        %834 = vmatprep.subr.bf16.mxu0 0
        %835 = vmatpush1.bf16.xpose.msra.mxu0 0
        %836 = vmatprep.subr.bf16.mxu0 0
        %837 = vmatpush1.bf16.xpose.msra.mxu0 0
        %838 = vmatprep.subr.bf16.mxu0 0
        %839 = vmatpush1.bf16.xpose.msra.mxu0 0
        %840 = vmatprep.subr.bf16.mxu0 0
        %841 = vmatpush1.bf16.xpose.msra.mxu0 0
        %842 = vmatprep.subr.bf16.mxu0 0
        %843 = vmatpush1.bf16.xpose.msra.mxu0 0
        %844 = vmatprep.subr.bf16.mxu0 0
        %845 = vmatpush1.bf16.xpose.msra.mxu0 0
        %846 = vmatprep.subr.bf16.mxu0 0
        %847 = vmatpush1.bf16.xpose.msra.mxu0 0
        %848 = vmatprep.subr.bf16.mxu0 0
        %849 = vmatpush1.bf16.xpose.msra.mxu0 0
        %850 = vmatprep.subr.bf16.mxu0 0
        %851 = vmatpush1.bf16.xpose.msra.mxu0 0
        %852 = vmatprep.subr.bf16.mxu0 0
        %853 = vmatpush1.bf16.xpose.msra.mxu0 0
        %854 = vmatprep.subr.bf16.mxu0 0
        %855 = vmatpush1.bf16.xpose.msra.mxu0 0
        %856 = vmatprep.mubr.bf16.mxu0 0
        %857 = vmatmul.mubr.bf16.gmra.mrb[0].mxu0 %v819
        %v858 = vpop.f32.mrb[0].mxu0
        %v859 = vadd.f32 0.0, %v858
        %v860 = vpop.f32.mrb[0].mxu0
        %v861 = vpop.f32.mrb[0].mxu0
        %v862 = vpop.f32.mrb[0].mxu0
        %863 = vdwg.mxu0
        %v865 = vsel %vm771, %v741, 0
        %v868 = vsel %vm771, %v755, 0
        %870 = vmatprep.subr.bf16.mxu0 0
        %871 = vmatpush1.bf16.xpose.msra.mxu0 %v868
        %872 = vmatprep.subr.bf16.mxu0 0
        %873 = vmatpush1.bf16.xpose.msra.mxu0 0
        %874 = vmatprep.subr.bf16.mxu0 0
        %875 = vmatpush1.bf16.xpose.msra.mxu0 0
        %876 = vmatprep.subr.bf16.mxu0 0
        %877 = vmatpush1.bf16.xpose.msra.mxu0 0
        %878 = vmatprep.subr.bf16.mxu0 0
        %879 = vmatpush1.bf16.xpose.msra.mxu0 0
        %880 = vmatprep.subr.bf16.mxu0 0
        %881 = vmatpush1.bf16.xpose.msra.mxu0 0
        %882 = vmatprep.subr.bf16.mxu0 0
        %883 = vmatpush1.bf16.xpose.msra.mxu0 0
        %884 = vmatprep.subr.bf16.mxu0 0
        %885 = vmatpush1.bf16.xpose.msra.mxu0 0
        %886 = vmatprep.subr.bf16.mxu0 0
        %887 = vmatpush1.bf16.xpose.msra.mxu0 0
        %888 = vmatprep.subr.bf16.mxu0 0
        %889 = vmatpush1.bf16.xpose.msra.mxu0 0
        %890 = vmatprep.subr.bf16.mxu0 0
        %891 = vmatpush1.bf16.xpose.msra.mxu0 0
        %892 = vmatprep.subr.bf16.mxu0 0
        %893 = vmatpush1.bf16.xpose.msra.mxu0 0
        %894 = vmatprep.subr.bf16.mxu0 0
        %895 = vmatpush1.bf16.xpose.msra.mxu0 0
        %896 = vmatprep.subr.bf16.mxu0 0
        %897 = vmatpush1.bf16.xpose.msra.mxu0 0
        %898 = vmatprep.subr.bf16.mxu0 0
        %899 = vmatpush1.bf16.xpose.msra.mxu0 0
        %900 = vmatprep.subr.bf16.mxu0 0
        %901 = vmatpush1.bf16.xpose.msra.mxu0 0
        %902 = vmatprep.mubr.bf16.mxu0 0
        %903 = vmatmul.mubr.bf16.gmra.mrb[0].mxu0 %v865
        %v904 = vpop.f32.mrb[0].mxu0
        %v905 = vadd.f32 0.0, %v904
        %v906 = vpop.f32.mrb[0].mxu0
        %v907 = vpop.f32.mrb[0].mxu0
        %v908 = vpop.f32.mrb[0].mxu0
        %909 = vdwg.mxu0
        %v911 = vsel %vm771, %v742, 0
        %v914 = vsel %vm771, %v756, 0
        %916 = vmatprep.subr.bf16.mxu0 0
        %917 = vmatpush1.bf16.xpose.msra.mxu0 %v914
        %918 = vmatprep.subr.bf16.mxu0 0
        %919 = vmatpush1.bf16.xpose.msra.mxu0 0
        %920 = vmatprep.subr.bf16.mxu0 0
        %921 = vmatpush1.bf16.xpose.msra.mxu0 0
        %922 = vmatprep.subr.bf16.mxu0 0
        %923 = vmatpush1.bf16.xpose.msra.mxu0 0
        %924 = vmatprep.subr.bf16.mxu0 0
        %925 = vmatpush1.bf16.xpose.msra.mxu0 0
        %926 = vmatprep.subr.bf16.mxu0 0
        %927 = vmatpush1.bf16.xpose.msra.mxu0 0
        %928 = vmatprep.subr.bf16.mxu0 0
        %929 = vmatpush1.bf16.xpose.msra.mxu0 0
        %930 = vmatprep.subr.bf16.mxu0 0
        %931 = vmatpush1.bf16.xpose.msra.mxu0 0
        %932 = vmatprep.subr.bf16.mxu0 0
        %933 = vmatpush1.bf16.xpose.msra.mxu0 0
        %934 = vmatprep.subr.bf16.mxu0 0
        %935 = vmatpush1.bf16.xpose.msra.mxu0 0
        %936 = vmatprep.subr.bf16.mxu0 0
        %937 = vmatpush1.bf16.xpose.msra.mxu0 0
        %938 = vmatprep.subr.bf16.mxu0 0
        %939 = vmatpush1.bf16.xpose.msra.mxu0 0
        %940 = vmatprep.subr.bf16.mxu0 0
        %941 = vmatpush1.bf16.xpose.msra.mxu0 0
        %942 = vmatprep.subr.bf16.mxu0 0
        %943 = vmatpush1.bf16.xpose.msra.mxu0 0
        %944 = vmatprep.subr.bf16.mxu0 0
        %945 = vmatpush1.bf16.xpose.msra.mxu0 0
        %946 = vmatprep.subr.bf16.mxu0 0
        %947 = vmatpush1.bf16.xpose.msra.mxu0 0
        %948 = vmatprep.mubr.bf16.mxu0 0
        %949 = vmatmul.mubr.bf16.gmra.mrb[0].mxu0 %v911
        %v950 = vpop.f32.mrb[0].mxu0
        %v951 = vadd.f32 0.0, %v950
        %v952 = vpop.f32.mrb[0].mxu0
        %v953 = vpop.f32.mrb[0].mxu0
        %v954 = vpop.f32.mrb[0].mxu0
        %955 = vdwg.mxu0
        %vm956 = vcmask 64512
        %v957 = vsel %vm956, %v813, -inf
        %958 = vmax.xlane.f32.xlu0 %v957
        %v959 = vpop.xlane.xlu0 %958
        %v960 = vsel %vm956, %v859, -inf
        %961 = vmax.xlane.f32.xlu0 %v960
        %v962 = vpop.xlane.xlu0 %961
        %v963 = vsel %vm956, %v905, -inf
        %964 = vmax.xlane.f32.xlu0 %v963
        %v965 = vpop.xlane.xlu0 %964
        %v966 = vsel %vm956, %v951, -inf
        %967 = vmax.xlane.f32.xlu0 %v966
        %v968 = vpop.xlane.xlu0 %967
        %v969 = vsub.f32 %v813, %v959
        %v970 = vsub.f32 %v859, %v962
        %v971 = vsub.f32 %v905, %v965
        %v972 = vsub.f32 %v951, %v968
        %v973 = vmul.f32 %v969, 1.442695
        %v974 = vpow.pop %v973
        %v975 = vmul.f32 %v970, 1.442695
        %v976 = vpow.pop %v975
        %v977 = vmul.f32 %v971, 1.442695
        %v978 = vpow.pop %v977
        %v979 = vmul.f32 %v972, 1.442695
        %v980 = vpow.pop %v979
        %v981 = vsel %vm956, %v974, 0.0
        %982 = vadd.xlane.f32.xlu0 %v981
        %v983 = vpop.xlane.xlu0 %982
        %v984 = vsel %vm956, %v976, 0.0
        %985 = vadd.xlane.f32.xlu0 %v984
        %v986 = vpop.xlane.xlu0 %985
        %v987 = vsel %vm956, %v978, 0.0
        %988 = vadd.xlane.f32.xlu0 %v987
        %v989 = vpop.xlane.xlu0 %988
        %v990 = vsel %vm956, %v980, 0.0
        %991 = vadd.xlane.f32.xlu0 %v990
        %v992 = vpop.xlane.xlu0 %991
        %v993 = vrcp.pop %v983
        %v994 = vrcp.pop %v986
        %v995 = vrcp.pop %v989
        %v996 = vrcp.pop %v992
        %v997 = vmul.f32 %v974, %v993
        %v998 = vmul.f32 %v976, %v994
        %v999 = vmul.f32 %v978, %v995
        %v1000 = vmul.f32 %v980, %v996
        %v1001 = vpack.c.bf16 %v997, %v997
        %v1002 = vpack.c.bf16 %v998, %v998
        %v1003 = vpack.c.bf16 %v999, %v999
        %v1004 = vpack.c.bf16 %v1000, %v1000
        %v1006 = vsel %vm956, %v1001, 0
        %vm1008 = vcmask 1043456
        %v1010 = vsel %vm1008, %v767, 0
        %1012 = vmatprep.subr.bf16.mxu0 0
        %1013 = vmatpush1.bf16.msra.mxu0 %v1010
        %1014 = vmatprep.subr.bf16.mxu0 0
        %1015 = vmatpush1.bf16.msra.mxu0 0
        %1016 = vmatprep.subr.bf16.mxu0 0
        %1017 = vmatpush1.bf16.msra.mxu0 0
        %1018 = vmatprep.subr.bf16.mxu0 0
        %1019 = vmatpush1.bf16.msra.mxu0 0
        %1020 = vmatprep.subr.bf16.mxu0 0
        %1021 = vmatpush1.bf16.msra.mxu0 0
        %1022 = vmatprep.subr.bf16.mxu0 0
        %1023 = vmatpush1.bf16.msra.mxu0 0
        %1024 = vmatprep.subr.bf16.mxu0 0
        %1025 = vmatpush1.bf16.msra.mxu0 0
        %1026 = vmatprep.subr.bf16.mxu0 0
        %1027 = vmatpush1.bf16.msra.mxu0 0
        %1028 = vmatprep.subr.bf16.mxu0 0
        %1029 = vmatpush1.bf16.msra.mxu0 0
        %1030 = vmatprep.subr.bf16.mxu0 0
        %1031 = vmatpush1.bf16.msra.mxu0 0
        %1032 = vmatprep.subr.bf16.mxu0 0
        %1033 = vmatpush1.bf16.msra.mxu0 0
        %1034 = vmatprep.subr.bf16.mxu0 0
        %1035 = vmatpush1.bf16.msra.mxu0 0
        %1036 = vmatprep.subr.bf16.mxu0 0
        %1037 = vmatpush1.bf16.msra.mxu0 0
        %1038 = vmatprep.subr.bf16.mxu0 0
        %1039 = vmatpush1.bf16.msra.mxu0 0
        %1040 = vmatprep.subr.bf16.mxu0 0
        %1041 = vmatpush1.bf16.msra.mxu0 0
        %1042 = vmatprep.subr.bf16.mxu0 0
        %1043 = vmatpush1.bf16.msra.mxu0 0
        %1044 = vmatprep.mubr.bf16.mxu0 0
        %1045 = vmatmul.mubr.bf16.gmra.mrb[0].mxu0 %v1006
        %v1046 = vpop.f32.mrb[0].mxu0
        %v1047 = vadd.f32 0.0, %v1046
        %v1048 = vpop.f32.mrb[0].mxu0
        %v1049 = vpop.f32.mrb[0].mxu0
        %v1050 = vpop.f32.mrb[0].mxu0
        %1051 = vdwg.mxu0
        %v1053 = vsel %vm956, %v1002, 0
        %v1056 = vsel %vm1008, %v768, 0
        %1058 = vmatprep.subr.bf16.mxu0 0
        %1059 = vmatpush1.bf16.msra.mxu0 %v1056
        %1060 = vmatprep.subr.bf16.mxu0 0
        %1061 = vmatpush1.bf16.msra.mxu0 0
        %1062 = vmatprep.subr.bf16.mxu0 0
        %1063 = vmatpush1.bf16.msra.mxu0 0
        %1064 = vmatprep.subr.bf16.mxu0 0
        %1065 = vmatpush1.bf16.msra.mxu0 0
        %1066 = vmatprep.subr.bf16.mxu0 0
        %1067 = vmatpush1.bf16.msra.mxu0 0
        %1068 = vmatprep.subr.bf16.mxu0 0
        %1069 = vmatpush1.bf16.msra.mxu0 0
        %1070 = vmatprep.subr.bf16.mxu0 0
        %1071 = vmatpush1.bf16.msra.mxu0 0
        %1072 = vmatprep.subr.bf16.mxu0 0
        %1073 = vmatpush1.bf16.msra.mxu0 0
        %1074 = vmatprep.subr.bf16.mxu0 0
        %1075 = vmatpush1.bf16.msra.mxu0 0
        %1076 = vmatprep.subr.bf16.mxu0 0
        %1077 = vmatpush1.bf16.msra.mxu0 0
        %1078 = vmatprep.subr.bf16.mxu0 0
        %1079 = vmatpush1.bf16.msra.mxu0 0
        %1080 = vmatprep.subr.bf16.mxu0 0
        %1081 = vmatpush1.bf16.msra.mxu0 0
        %1082 = vmatprep.subr.bf16.mxu0 0
        %1083 = vmatpush1.bf16.msra.mxu0 0
        %1084 = vmatprep.subr.bf16.mxu0 0
        %1085 = vmatpush1.bf16.msra.mxu0 0
        %1086 = vmatprep.subr.bf16.mxu0 0
        %1087 = vmatpush1.bf16.msra.mxu0 0
        %1088 = vmatprep.subr.bf16.mxu0 0
        %1089 = vmatpush1.bf16.msra.mxu0 0
        %1090 = vmatprep.mubr.bf16.mxu0 0
        %1091 = vmatmul.mubr.bf16.gmra.mrb[0].mxu0 %v1053
        %v1092 = vpop.f32.mrb[0].mxu0
        %v1093 = vadd.f32 0.0, %v1092
        %v1094 = vpop.f32.mrb[0].mxu0
        %v1095 = vpop.f32.mrb[0].mxu0
        %v1096 = vpop.f32.mrb[0].mxu0
        %1097 = vdwg.mxu0
        %v1099 = vsel %vm956, %v1003, 0
        %v1102 = vsel %vm1008, %v769, 0
        %1104 = vmatprep.subr.bf16.mxu0 0
        %1105 = vmatpush1.bf16.msra.mxu0 %v1102
        %1106 = vmatprep.subr.bf16.mxu0 0
        %1107 = vmatpush1.bf16.msra.mxu0 0
        %1108 = vmatprep.subr.bf16.mxu0 0
        %1109 = vmatpush1.bf16.msra.mxu0 0
        %1110 = vmatprep.subr.bf16.mxu0 0
        %1111 = vmatpush1.bf16.msra.mxu0 0
        %1112 = vmatprep.subr.bf16.mxu0 0
        %1113 = vmatpush1.bf16.msra.mxu0 0
        %1114 = vmatprep.subr.bf16.mxu0 0
        %1115 = vmatpush1.bf16.msra.mxu0 0
        %1116 = vmatprep.subr.bf16.mxu0 0
        %1117 = vmatpush1.bf16.msra.mxu0 0
        %1118 = vmatprep.subr.bf16.mxu0 0
        %1119 = vmatpush1.bf16.msra.mxu0 0
        %1120 = vmatprep.subr.bf16.mxu0 0
        %1121 = vmatpush1.bf16.msra.mxu0 0
        %1122 = vmatprep.subr.bf16.mxu0 0
        %1123 = vmatpush1.bf16.msra.mxu0 0
        %1124 = vmatprep.subr.bf16.mxu0 0
        %1125 = vmatpush1.bf16.msra.mxu0 0
        %1126 = vmatprep.subr.bf16.mxu0 0
        %1127 = vmatpush1.bf16.msra.mxu0 0
        %1128 = vmatprep.subr.bf16.mxu0 0
        %1129 = vmatpush1.bf16.msra.mxu0 0
        %1130 = vmatprep.subr.bf16.mxu0 0
        %1131 = vmatpush1.bf16.msra.mxu0 0
        %1132 = vmatprep.subr.bf16.mxu0 0
        %1133 = vmatpush1.bf16.msra.mxu0 0
        %1134 = vmatprep.subr.bf16.mxu0 0
        %1135 = vmatpush1.bf16.msra.mxu0 0
        %1136 = vmatprep.mubr.bf16.mxu0 0
        %1137 = vmatmul.mubr.bf16.gmra.mrb[0].mxu0 %v1099
        %v1138 = vpop.f32.mrb[0].mxu0
        %v1139 = vadd.f32 0.0, %v1138
        %v1140 = vpop.f32.mrb[0].mxu0
        %v1141 = vpop.f32.mrb[0].mxu0
        %v1142 = vpop.f32.mrb[0].mxu0
        %1143 = vdwg.mxu0
        %v1145 = vsel %vm956, %v1004, 0
        %v1148 = vsel %vm1008, %v770, 0
        %1150 = vmatprep.subr.bf16.mxu0 0
        %1151 = vmatpush1.bf16.msra.mxu0 %v1148
        %1152 = vmatprep.subr.bf16.mxu0 0
        %1153 = vmatpush1.bf16.msra.mxu0 0
        %1154 = vmatprep.subr.bf16.mxu0 0
        %1155 = vmatpush1.bf16.msra.mxu0 0
        %1156 = vmatprep.subr.bf16.mxu0 0
        %1157 = vmatpush1.bf16.msra.mxu0 0
        %1158 = vmatprep.subr.bf16.mxu0 0
        %1159 = vmatpush1.bf16.msra.mxu0 0
        %1160 = vmatprep.subr.bf16.mxu0 0
        %1161 = vmatpush1.bf16.msra.mxu0 0
        %1162 = vmatprep.subr.bf16.mxu0 0
        %1163 = vmatpush1.bf16.msra.mxu0 0
        %1164 = vmatprep.subr.bf16.mxu0 0
        %1165 = vmatpush1.bf16.msra.mxu0 0
        %1166 = vmatprep.subr.bf16.mxu0 0
        %1167 = vmatpush1.bf16.msra.mxu0 0
        %1168 = vmatprep.subr.bf16.mxu0 0
        %1169 = vmatpush1.bf16.msra.mxu0 0
        %1170 = vmatprep.subr.bf16.mxu0 0
        %1171 = vmatpush1.bf16.msra.mxu0 0
        %1172 = vmatprep.subr.bf16.mxu0 0
        %1173 = vmatpush1.bf16.msra.mxu0 0
        %1174 = vmatprep.subr.bf16.mxu0 0
        %1175 = vmatpush1.bf16.msra.mxu0 0
        %1176 = vmatprep.subr.bf16.mxu0 0
        %1177 = vmatpush1.bf16.msra.mxu0 0
        %1178 = vmatprep.subr.bf16.mxu0 0
        %1179 = vmatpush1.bf16.msra.mxu0 0
        %1180 = vmatprep.subr.bf16.mxu0 0
        %1181 = vmatpush1.bf16.msra.mxu0 0
        %1182 = vmatprep.mubr.bf16.mxu0 0
        %1183 = vmatmul.mubr.bf16.gmra.mrb[0].mxu0 %v1145
        %v1184 = vpop.f32.mrb[0].mxu0
        %v1185 = vadd.f32 0.0, %v1184
        %v1186 = vpop.f32.mrb[0].mxu0
        %v1187 = vpop.f32.mrb[0].mxu0
        %v1188 = vpop.f32.mrb[0].mxu0
        %1189 = vdwg.mxu0
        %v1190 = vpack.c.bf16 %v1047, %v1047
        %v1191 = vpack.c.bf16 %v1093, %v1093
        %v1192 = vpack.c.bf16 %v1139, %v1139
        %v1193 = vpack.c.bf16 %v1185, %v1185
        %v1194 = vld [vmem:[#allocation8] sm:$0xf]
        %v1195 = vld [vmem:[#allocation8 + $0x4] sm:$0xf]
        %v1196 = vld [vmem:[#allocation8 + $0x8] sm:$0xf]
        %v1197 = vld [vmem:[#allocation8 + $0xc] sm:$0xf]
        %v1198 = vld [vmem:[#allocation8 + $0x10] sm:$0xf]
        %v1199 = vld [vmem:[#allocation8 + $0x14] sm:$0xf]
        %v1200 = vld [vmem:[#allocation8 + $0x18] sm:$0xf]
        %v1201 = vld [vmem:[#allocation8 + $0x1c] sm:$0xf]
        %v1202 = vld [vmem:[#allocation8 + $0x20] sm:$0xf]
        %v1203 = vld [vmem:[#allocation8 + $0x24] sm:$0xf]
        %v1204 = vld [vmem:[#allocation8 + $0x28] sm:$0xf]
        %v1205 = vld [vmem:[#allocation8 + $0x2c] sm:$0xf]
        %v1206 = vld [vmem:[#allocation8 + $0x30] sm:$0xf]
        %v1207 = vld [vmem:[#allocation8 + $0x34] sm:$0xf]
        %v1208 = vld [vmem:[#allocation8 + $0x38] sm:$0xf]
        %v1209 = vld [vmem:[#allocation8 + $0x3c] sm:$0xf]
        %v1214 = vunpack.c.l.b16 %v1194
        %v1215 = vunpack.c.l.b16 %v1195
        %v1216 = vunpack.c.l.b16 %v1196
        %v1217 = vunpack.c.l.b16 %v1197
        %v1218 = vpack.c.b16 %v1215, %v1214
        %v1219 = vpack.c.b16 %v1217, %v1216
        %v1223 = vsel %vm771, %v1190, 0
        %1225 = vmatprep.subr.bf16.mxu0 0
        %1226 = vmatpush1.bf16.msra.mxu0 %v1218
        %1227 = vmatprep.subr.bf16.mxu0 0
        %1228 = vmatpush1.bf16.msra.mxu0 %v1219
        %1229 = vmatprep.subr.bf16.mxu0 0
        %1230 = vmatpush1.bf16.msra.mxu0 0
        %1231 = vmatprep.subr.bf16.mxu0 0
        %1232 = vmatpush1.bf16.msra.mxu0 0
        %1233 = vmatprep.subr.bf16.mxu0 0
        %1234 = vmatpush1.bf16.msra.mxu0 0
        %1235 = vmatprep.subr.bf16.mxu0 0
        %1236 = vmatpush1.bf16.msra.mxu0 0
        %1237 = vmatprep.subr.bf16.mxu0 0
        %1238 = vmatpush1.bf16.msra.mxu0 0
        %1239 = vmatprep.subr.bf16.mxu0 0
        %1240 = vmatpush1.bf16.msra.mxu0 0
        %1241 = vmatprep.subr.bf16.mxu0 0
        %1242 = vmatpush1.bf16.msra.mxu0 0
        %1243 = vmatprep.subr.bf16.mxu0 0
        %1244 = vmatpush1.bf16.msra.mxu0 0
        %1245 = vmatprep.subr.bf16.mxu0 0
        %1246 = vmatpush1.bf16.msra.mxu0 0
        %1247 = vmatprep.subr.bf16.mxu0 0
        %1248 = vmatpush1.bf16.msra.mxu0 0
        %1249 = vmatprep.subr.bf16.mxu0 0
        %1250 = vmatpush1.bf16.msra.mxu0 0
        %1251 = vmatprep.subr.bf16.mxu0 0
        %1252 = vmatpush1.bf16.msra.mxu0 0
        %1253 = vmatprep.subr.bf16.mxu0 0
        %1254 = vmatpush1.bf16.msra.mxu0 0
        %1255 = vmatprep.subr.bf16.mxu0 0
        %1256 = vmatpush1.bf16.msra.mxu0 0
        %1257 = vmatprep.mubr.bf16.mxu0 0
        %1258 = vmatmul.mubr.bf16.gmra.mrb[0].mxu0 %v1223
        %v1259 = vpop.f32.mrb[0].mxu0
        %v1260 = vadd.f32 0.0, %v1259
        %v1261 = vpop.f32.mrb[0].mxu0
        %v1262 = vpop.f32.mrb[0].mxu0
        %v1263 = vpop.f32.mrb[0].mxu0
        %1264 = vdwg.mxu0
        %v1269 = vunpack.c.l.b16 %v1198
        %v1270 = vunpack.c.l.b16 %v1199
        %v1271 = vunpack.c.l.b16 %v1200
        %v1272 = vunpack.c.l.b16 %v1201
        %v1273 = vpack.c.b16 %v1270, %v1269
        %v1274 = vpack.c.b16 %v1272, %v1271
        %v1278 = vsel %vm771, %v1191, 0
        %1280 = vmatprep.subr.bf16.mxu0 0
        %1281 = vmatpush1.bf16.msra.mxu0 %v1273
        %1282 = vmatprep.subr.bf16.mxu0 0
        %1283 = vmatpush1.bf16.msra.mxu0 %v1274
        %1284 = vmatprep.subr.bf16.mxu0 0
        %1285 = vmatpush1.bf16.msra.mxu0 0
        %1286 = vmatprep.subr.bf16.mxu0 0
        %1287 = vmatpush1.bf16.msra.mxu0 0
        %1288 = vmatprep.subr.bf16.mxu0 0
        %1289 = vmatpush1.bf16.msra.mxu0 0
        %1290 = vmatprep.subr.bf16.mxu0 0
        %1291 = vmatpush1.bf16.msra.mxu0 0
        %1292 = vmatprep.subr.bf16.mxu0 0
        %1293 = vmatpush1.bf16.msra.mxu0 0
        %1294 = vmatprep.subr.bf16.mxu0 0
        %1295 = vmatpush1.bf16.msra.mxu0 0
        %1296 = vmatprep.subr.bf16.mxu0 0
        %1297 = vmatpush1.bf16.msra.mxu0 0
        %1298 = vmatprep.subr.bf16.mxu0 0
        %1299 = vmatpush1.bf16.msra.mxu0 0
        %1300 = vmatprep.subr.bf16.mxu0 0
        %1301 = vmatpush1.bf16.msra.mxu0 0
        %1302 = vmatprep.subr.bf16.mxu0 0
        %1303 = vmatpush1.bf16.msra.mxu0 0
        %1304 = vmatprep.subr.bf16.mxu0 0
        %1305 = vmatpush1.bf16.msra.mxu0 0
        %1306 = vmatprep.subr.bf16.mxu0 0
        %1307 = vmatpush1.bf16.msra.mxu0 0
        %1308 = vmatprep.subr.bf16.mxu0 0
        %1309 = vmatpush1.bf16.msra.mxu0 0
        %1310 = vmatprep.subr.bf16.mxu0 0
        %1311 = vmatpush1.bf16.msra.mxu0 0
        %1312 = vmatprep.mubr.bf16.mxu0 0
        %1313 = vmatmul.mubr.bf16.gmra.mrb[0].mxu0 %v1278
        %v1314 = vpop.f32.mrb[0].mxu0
        %v1315 = vadd.f32 0.0, %v1314
        %v1316 = vpop.f32.mrb[0].mxu0
        %v1317 = vpop.f32.mrb[0].mxu0
        %v1318 = vpop.f32.mrb[0].mxu0
        %1319 = vdwg.mxu0
        %v1324 = vunpack.c.l.b16 %v1202
        %v1325 = vunpack.c.l.b16 %v1203
        %v1326 = vunpack.c.l.b16 %v1204
        %v1327 = vunpack.c.l.b16 %v1205
        %v1328 = vpack.c.b16 %v1325, %v1324
        %v1329 = vpack.c.b16 %v1327, %v1326
        %v1333 = vsel %vm771, %v1192, 0
        %1335 = vmatprep.subr.bf16.mxu0 0
        %1336 = vmatpush1.bf16.msra.mxu0 %v1328
        %1337 = vmatprep.subr.bf16.mxu0 0
        %1338 = vmatpush1.bf16.msra.mxu0 %v1329
        %1339 = vmatprep.subr.bf16.mxu0 0
        %1340 = vmatpush1.bf16.msra.mxu0 0
        %1341 = vmatprep.subr.bf16.mxu0 0
        %1342 = vmatpush1.bf16.msra.mxu0 0
        %1343 = vmatprep.subr.bf16.mxu0 0
        %1344 = vmatpush1.bf16.msra.mxu0 0
        %1345 = vmatprep.subr.bf16.mxu0 0
        %1346 = vmatpush1.bf16.msra.mxu0 0
        %1347 = vmatprep.subr.bf16.mxu0 0
        %1348 = vmatpush1.bf16.msra.mxu0 0
        %1349 = vmatprep.subr.bf16.mxu0 0
        %1350 = vmatpush1.bf16.msra.mxu0 0
        %1351 = vmatprep.subr.bf16.mxu0 0
        %1352 = vmatpush1.bf16.msra.mxu0 0
        %1353 = vmatprep.subr.bf16.mxu0 0
        %1354 = vmatpush1.bf16.msra.mxu0 0
        %1355 = vmatprep.subr.bf16.mxu0 0
        %1356 = vmatpush1.bf16.msra.mxu0 0
        %1357 = vmatprep.subr.bf16.mxu0 0
        %1358 = vmatpush1.bf16.msra.mxu0 0
        %1359 = vmatprep.subr.bf16.mxu0 0
        %1360 = vmatpush1.bf16.msra.mxu0 0
        %1361 = vmatprep.subr.bf16.mxu0 0
        %1362 = vmatpush1.bf16.msra.mxu0 0
        %1363 = vmatprep.subr.bf16.mxu0 0
        %1364 = vmatpush1.bf16.msra.mxu0 0
        %1365 = vmatprep.subr.bf16.mxu0 0
        %1366 = vmatpush1.bf16.msra.mxu0 0
        %1367 = vmatprep.mubr.bf16.mxu0 0
        %1368 = vmatmul.mubr.bf16.gmra.mrb[0].mxu0 %v1333
        %v1369 = vpop.f32.mrb[0].mxu0
        %v1370 = vadd.f32 0.0, %v1369
        %v1371 = vpop.f32.mrb[0].mxu0
        %v1372 = vpop.f32.mrb[0].mxu0
        %v1373 = vpop.f32.mrb[0].mxu0
        %1374 = vdwg.mxu0
        %v1379 = vunpack.c.l.b16 %v1206
        %v1380 = vunpack.c.l.b16 %v1207
        %v1381 = vunpack.c.l.b16 %v1208
        %v1382 = vunpack.c.l.b16 %v1209
        %v1383 = vpack.c.b16 %v1380, %v1379
        %v1384 = vpack.c.b16 %v1382, %v1381
        %v1388 = vsel %vm771, %v1193, 0
        %1390 = vmatprep.subr.bf16.mxu0 0
        %1391 = vmatpush1.bf16.msra.mxu0 %v1383
        %1392 = vmatprep.subr.bf16.mxu0 0
        %1393 = vmatpush1.bf16.msra.mxu0 %v1384
        %1394 = vmatprep.subr.bf16.mxu0 0
        %1395 = vmatpush1.bf16.msra.mxu0 0
        %1396 = vmatprep.subr.bf16.mxu0 0
        %1397 = vmatpush1.bf16.msra.mxu0 0
        %1398 = vmatprep.subr.bf16.mxu0 0
        %1399 = vmatpush1.bf16.msra.mxu0 0
        %1400 = vmatprep.subr.bf16.mxu0 0
        %1401 = vmatpush1.bf16.msra.mxu0 0
        %1402 = vmatprep.subr.bf16.mxu0 0
        %1403 = vmatpush1.bf16.msra.mxu0 0
        %1404 = vmatprep.subr.bf16.mxu0 0
        %1405 = vmatpush1.bf16.msra.mxu0 0
        %1406 = vmatprep.subr.bf16.mxu0 0
        %1407 = vmatpush1.bf16.msra.mxu0 0
        %1408 = vmatprep.subr.bf16.mxu0 0
        %1409 = vmatpush1.bf16.msra.mxu0 0
        %1410 = vmatprep.subr.bf16.mxu0 0
        %1411 = vmatpush1.bf16.msra.mxu0 0
        %1412 = vmatprep.subr.bf16.mxu0 0
        %1413 = vmatpush1.bf16.msra.mxu0 0
        %1414 = vmatprep.subr.bf16.mxu0 0
        %1415 = vmatpush1.bf16.msra.mxu0 0
        %1416 = vmatprep.subr.bf16.mxu0 0
        %1417 = vmatpush1.bf16.msra.mxu0 0
        %1418 = vmatprep.subr.bf16.mxu0 0
        %1419 = vmatpush1.bf16.msra.mxu0 0
        %1420 = vmatprep.subr.bf16.mxu0 0
        %1421 = vmatpush1.bf16.msra.mxu0 0
        %1422 = vmatprep.mubr.bf16.mxu0 0
        %1423 = vmatmul.mubr.bf16.gmra.mrb[0].mxu0 %v1388
        %v1424 = vpop.f32.mrb[0].mxu0
        %v1425 = vadd.f32 0.0, %v1424
        %v1426 = vpop.f32.mrb[0].mxu0
        %v1427 = vpop.f32.mrb[0].mxu0
        %v1428 = vpop.f32.mrb[0].mxu0
        %1429 = vdwg.mxu0
        %v1430 = vadd.f32 %v1260, %v1315
        %v1431 = vadd.f32 %v1430, %v1370
        %v1432 = vadd.f32 %v1431, %v1425
        %v1433 = vld [vmem:[#allocation10] sm:$0x1]
        %v1435 = vlaneseq
        %v1436 = vshrl.u32 %v1435, 7
        %v1437 = vsub.s32 0, %v1436
        %v1438 = vrot.slane %v1433, %v1437
        %v1440 = vadd.f32 %v1432, %v1438
        %v1441 = vadd.f32 %v457, %v1440
        %1442 = vadd.xlane.f32.xlu0 %v1441
        %v1443 = vpop.xlane.xlu0 %1442
        %v1444 = vmul.f32 %v1443, %v460
        %v1445 = vsub.f32 %v1441, %v1444
        %v1446 = vmul.f32 %v1445, %v1445
        %1447 = vadd.xlane.f32.xlu0 %v1446
        %v1448 = vpop.xlane.xlu0 %1447
        %v1449 = vmul.f32 %v1448, %v460
        %v1450 = vadd.f32 %v1449, 1e-05
        %v1451 = vrsqrt.pop %v1450
        %v1452 = vmul.f32 %v1445, %v1451
        %v1453 = vpack.c.bf16 %v1452, %v1452
        %v1454 = vld [vmem:[#allocation11] sm:$0xff]
        %v1455 = vld [vmem:[#allocation11 + $0x8] sm:$0xff]
        %v1456 = vld [vmem:[#allocation11 + $0x10] sm:$0xff]
        %v1457 = vld [vmem:[#allocation11 + $0x18] sm:$0xff]
        %v1458 = vld [vmem:[#allocation11 + $0x20] sm:$0xff]
        %v1459 = vld [vmem:[#allocation11 + $0x28] sm:$0xff]
        %v1460 = vld [vmem:[#allocation11 + $0x30] sm:$0xff]
        %v1461 = vld [vmem:[#allocation11 + $0x38] sm:$0xff]
        %v1462 = vld [vmem:[#allocation11 + $0x40] sm:$0xff]
        %v1463 = vld [vmem:[#allocation11 + $0x48] sm:$0xff]
        %v1464 = vld [vmem:[#allocation11 + $0x50] sm:$0xff]
        %v1465 = vld [vmem:[#allocation11 + $0x58] sm:$0xff]
        %v1466 = vld [vmem:[#allocation11 + $0x60] sm:$0xff]
        %v1467 = vld [vmem:[#allocation11 + $0x68] sm:$0xff]
        %v1468 = vld [vmem:[#allocation11 + $0x70] sm:$0xff]
        %v1469 = vld [vmem:[#allocation11 + $0x78] sm:$0xff]
        %v1470 = vld [vmem:[#allocation11 + $0x80] sm:$0xff]
        %v1471 = vld [vmem:[#allocation11 + $0x88] sm:$0xff]
        %v1472 = vld [vmem:[#allocation11 + $0x90] sm:$0xff]
        %v1473 = vld [vmem:[#allocation11 + $0x98] sm:$0xff]
        %v1474 = vld [vmem:[#allocation11 + $0xa0] sm:$0xff]
        %v1475 = vld [vmem:[#allocation11 + $0xa8] sm:$0xff]
        %v1476 = vld [vmem:[#allocation11 + $0xb0] sm:$0xff]
        %v1477 = vld [vmem:[#allocation11 + $0xb8] sm:$0xff]
        %v1478 = vld [vmem:[#allocation11 + $0xc0] sm:$0xff]
        %v1479 = vld [vmem:[#allocation11 + $0xc8] sm:$0xff]
        %v1480 = vld [vmem:[#allocation11 + $0xd0] sm:$0xff]
        %v1481 = vld [vmem:[#allocation11 + $0xd8] sm:$0xff]
        %v1482 = vld [vmem:[#allocation11 + $0xe0] sm:$0xff]
        %v1483 = vld [vmem:[#allocation11 + $0xe8] sm:$0xff]
        %v1484 = vld [vmem:[#allocation11 + $0xf0] sm:$0xff]
        %v1485 = vld [vmem:[#allocation11 + $0xf8] sm:$0xff]
        %v1486 = vld [vmem:[#allocation13] sm:$0xf]
        %v1488 = vlaneseq
        %v1489 = vshrl.u32 %v1488, 7
        %v1490 = vsub.s32 0, %v1489
        %v1491 = vrot.slane %v1486, %v1490
        %v1492 = vlaneseq
        %v1493 = vshrl.u32 %v1492, 7
        %v1494 = vsub.s32 1, %v1493
        %v1495 = vrot.slane %v1486, %v1494
        %v1496 = vlaneseq
        %v1497 = vshrl.u32 %v1496, 7
        %v1498 = vsub.s32 2, %v1497
        %v1499 = vrot.slane %v1486, %v1498
        %v1500 = vlaneseq
        %v1501 = vshrl.u32 %v1500, 7
        %v1502 = vsub.s32 3, %v1501
        %v1503 = vrot.slane %v1486, %v1502
        %v1540 = vunpack.c.l.b16 %v1454
        %v1541 = vunpack.c.h.b16 %v1454
        %v1542 = vunpack.c.l.b16 %v1455
        %v1543 = vunpack.c.h.b16 %v1455
        %v1544 = vunpack.c.l.b16 %v1456
        %v1545 = vunpack.c.h.b16 %v1456
        %v1546 = vunpack.c.l.b16 %v1457
        %v1547 = vunpack.c.h.b16 %v1457
        %v1548 = vunpack.c.l.b16 %v1458
        %v1549 = vunpack.c.h.b16 %v1458
        %v1550 = vunpack.c.l.b16 %v1459
        %v1551 = vunpack.c.h.b16 %v1459
        %v1552 = vunpack.c.l.b16 %v1460
        %v1553 = vunpack.c.h.b16 %v1460
        %v1554 = vunpack.c.l.b16 %v1461
        %v1555 = vunpack.c.h.b16 %v1461
        %v1556 = vunpack.c.l.b16 %v1462
        %v1557 = vunpack.c.h.b16 %v1462
        %v1558 = vunpack.c.l.b16 %v1463
        %v1559 = vunpack.c.h.b16 %v1463
        %v1560 = vunpack.c.l.b16 %v1464
        %v1561 = vunpack.c.h.b16 %v1464
        %v1562 = vunpack.c.l.b16 %v1465
        %v1563 = vunpack.c.h.b16 %v1465
        %v1564 = vunpack.c.l.b16 %v1466
        %v1565 = vunpack.c.h.b16 %v1466
        %v1566 = vunpack.c.l.b16 %v1467
        %v1567 = vunpack.c.h.b16 %v1467
        %v1568 = vunpack.c.l.b16 %v1468
        %v1569 = vunpack.c.h.b16 %v1468
        %v1570 = vunpack.c.l.b16 %v1469
        %v1571 = vunpack.c.h.b16 %v1469
        %v1572 = vunpack.c.l.b16 %v1470
        %v1573 = vunpack.c.h.b16 %v1470
        %v1574 = vunpack.c.l.b16 %v1471
        %v1575 = vunpack.c.h.b16 %v1471
        %v1576 = vunpack.c.l.b16 %v1472
        %v1577 = vunpack.c.h.b16 %v1472
        %v1578 = vunpack.c.l.b16 %v1473
        %v1579 = vunpack.c.h.b16 %v1473
        %v1580 = vunpack.c.l.b16 %v1474
        %v1581 = vunpack.c.h.b16 %v1474
        %v1582 = vunpack.c.l.b16 %v1475
        %v1583 = vunpack.c.h.b16 %v1475
        %v1584 = vunpack.c.l.b16 %v1476
        %v1585 = vunpack.c.h.b16 %v1476
        %v1586 = vunpack.c.l.b16 %v1477
        %v1587 = vunpack.c.h.b16 %v1477
        %v1588 = vunpack.c.l.b16 %v1478
        %v1589 = vunpack.c.h.b16 %v1478
        %v1590 = vunpack.c.l.b16 %v1479
        %v1591 = vunpack.c.h.b16 %v1479
        %v1592 = vunpack.c.l.b16 %v1480
        %v1593 = vunpack.c.h.b16 %v1480
        %v1594 = vunpack.c.l.b16 %v1481
        %v1595 = vunpack.c.h.b16 %v1481
        %v1596 = vunpack.c.l.b16 %v1482
        %v1597 = vunpack.c.h.b16 %v1482
        %v1598 = vunpack.c.l.b16 %v1483
        %v1599 = vunpack.c.h.b16 %v1483
        %v1600 = vunpack.c.l.b16 %v1484
        %v1601 = vunpack.c.h.b16 %v1484
        %v1602 = vunpack.c.l.b16 %v1485
        %v1603 = vunpack.c.h.b16 %v1485
        %v1604 = vpack.c.b16 %v1544, %v1540
        %v1605 = vpack.c.b16 %v1545, %v1541
        %v1606 = vpack.c.b16 %v1546, %v1542
        %v1607 = vpack.c.b16 %v1547, %v1543
        %v1608 = vpack.c.b16 %v1552, %v1548
        %v1609 = vpack.c.b16 %v1553, %v1549
        %v1610 = vpack.c.b16 %v1554, %v1550
        %v1611 = vpack.c.b16 %v1555, %v1551
        %v1612 = vpack.c.b16 %v1560, %v1556
        %v1613 = vpack.c.b16 %v1561, %v1557
        %v1614 = vpack.c.b16 %v1562, %v1558
        %v1615 = vpack.c.b16 %v1563, %v1559
        %v1616 = vpack.c.b16 %v1568, %v1564
        %v1617 = vpack.c.b16 %v1569, %v1565
        %v1618 = vpack.c.b16 %v1570, %v1566
        %v1619 = vpack.c.b16 %v1571, %v1567
        %v1620 = vpack.c.b16 %v1576, %v1572
        %v1621 = vpack.c.b16 %v1577, %v1573
        %v1622 = vpack.c.b16 %v1578, %v1574
        %v1623 = vpack.c.b16 %v1579, %v1575
        %v1624 = vpack.c.b16 %v1584, %v1580
        %v1625 = vpack.c.b16 %v1585, %v1581
        %v1626 = vpack.c.b16 %v1586, %v1582
        %v1627 = vpack.c.b16 %v1587, %v1583
        %v1628 = vpack.c.b16 %v1592, %v1588
        %v1629 = vpack.c.b16 %v1593, %v1589
        %v1630 = vpack.c.b16 %v1594, %v1590
        %v1631 = vpack.c.b16 %v1595, %v1591
        %v1632 = vpack.c.b16 %v1600, %v1596
        %v1633 = vpack.c.b16 %v1601, %v1597
        %v1634 = vpack.c.b16 %v1602, %v1598
        %v1635 = vpack.c.b16 %v1603, %v1599
        %1668 = vmatprep.subr.bf16.mxu0 %v1605
        %1669 = vmatpush1.bf16.msra.mxu0 %v1604
        %1670 = vmatprep.subr.bf16.mxu0 %v1609
        %1671 = vmatpush1.bf16.msra.mxu0 %v1608
        %1672 = vmatprep.subr.bf16.mxu0 %v1613
        %1673 = vmatpush1.bf16.msra.mxu0 %v1612
        %1674 = vmatprep.subr.bf16.mxu0 %v1617
        %1675 = vmatpush1.bf16.msra.mxu0 %v1616
        %1676 = vmatprep.subr.bf16.mxu0 %v1621
        %1677 = vmatpush1.bf16.msra.mxu0 %v1620
        %1678 = vmatprep.subr.bf16.mxu0 %v1625
        %1679 = vmatpush1.bf16.msra.mxu0 %v1624
        %1680 = vmatprep.subr.bf16.mxu0 %v1629
        %1681 = vmatpush1.bf16.msra.mxu0 %v1628
        %1682 = vmatprep.subr.bf16.mxu0 %v1633
        %1683 = vmatpush1.bf16.msra.mxu0 %v1632
        %1684 = vmatprep.subr.bf16.mxu0 0
        %1685 = vmatpush1.bf16.msra.mxu0 0
        %1686 = vmatprep.subr.bf16.mxu0 0
        %1687 = vmatpush1.bf16.msra.mxu0 0
        %1688 = vmatprep.subr.bf16.mxu0 0
        %1689 = vmatpush1.bf16.msra.mxu0 0
        %1690 = vmatprep.subr.bf16.mxu0 0
        %1691 = vmatpush1.bf16.msra.mxu0 0
        %1692 = vmatprep.subr.bf16.mxu0 0
        %1693 = vmatpush1.bf16.msra.mxu0 0
        %1694 = vmatprep.subr.bf16.mxu0 0
        %1695 = vmatpush1.bf16.msra.mxu0 0
        %1696 = vmatprep.subr.bf16.mxu0 0
        %1697 = vmatpush1.bf16.msra.mxu0 0
        %1698 = vmatprep.subr.bf16.mxu0 0
        %1699 = vmatpush1.bf16.msra.mxu0 0
        %1700 = vmatprep.mubr.bf16.mxu0 0
        %1701 = vmatmul.mubr.bf16.gmra.mrb[0].mxu0 %v1453
        %v1702 = vpop.f32.mrb[0].mxu0
        %v1703 = vadd.f32 %v1491, %v1702
        %v1704 = vpop.f32.mrb[0].mxu0
        %v1705 = vadd.f32 %v1495, %v1704
        %v1706 = vpop.f32.mrb[0].mxu0
        %v1707 = vpop.f32.mrb[0].mxu0
        %1708 = vdwg.mxu0
        %1709 = vmatprep.subr.bf16.mxu0 %v1607
        %1710 = vmatpush1.bf16.msra.mxu0 %v1606
        %1711 = vmatprep.subr.bf16.mxu0 %v1611
        %1712 = vmatpush1.bf16.msra.mxu0 %v1610
        %1713 = vmatprep.subr.bf16.mxu0 %v1615
        %1714 = vmatpush1.bf16.msra.mxu0 %v1614
        %1715 = vmatprep.subr.bf16.mxu0 %v1619
        %1716 = vmatpush1.bf16.msra.mxu0 %v1618
        %1717 = vmatprep.subr.bf16.mxu0 %v1623
        %1718 = vmatpush1.bf16.msra.mxu0 %v1622
        %1719 = vmatprep.subr.bf16.mxu0 %v1627
        %1720 = vmatpush1.bf16.msra.mxu0 %v1626
        %1721 = vmatprep.subr.bf16.mxu0 %v1631
        %1722 = vmatpush1.bf16.msra.mxu0 %v1630
        %1723 = vmatprep.subr.bf16.mxu0 %v1635
        %1724 = vmatpush1.bf16.msra.mxu0 %v1634
        %1725 = vmatprep.subr.bf16.mxu0 0
        %1726 = vmatpush1.bf16.msra.mxu0 0
        %1727 = vmatprep.subr.bf16.mxu0 0
        %1728 = vmatpush1.bf16.msra.mxu0 0
        %1729 = vmatprep.subr.bf16.mxu0 0
        %1730 = vmatpush1.bf16.msra.mxu0 0
        %1731 = vmatprep.subr.bf16.mxu0 0
        %1732 = vmatpush1.bf16.msra.mxu0 0
        %1733 = vmatprep.subr.bf16.mxu0 0
        %1734 = vmatpush1.bf16.msra.mxu0 0
        %1735 = vmatprep.subr.bf16.mxu0 0
        %1736 = vmatpush1.bf16.msra.mxu0 0
        %1737 = vmatprep.subr.bf16.mxu0 0
        %1738 = vmatpush1.bf16.msra.mxu0 0
        %1739 = vmatprep.subr.bf16.mxu0 0
        %1740 = vmatpush1.bf16.msra.mxu0 0
        %1741 = vmatprep.mubr.bf16.mxu0 0
        %1742 = vmatmul.mubr.bf16.gmra.mrb[0].mxu0 %v1453
        %v1743 = vpop.f32.mrb[0].mxu0
        %v1744 = vadd.f32 %v1499, %v1743
        %v1745 = vpop.f32.mrb[0].mxu0
        %v1746 = vadd.f32 %v1503, %v1745
        %v1747 = vpop.f32.mrb[0].mxu0
        %v1748 = vpop.f32.mrb[0].mxu0
        %1749 = vdwg.mxu0
        %v1750 = vmul.f32 %v1703, 0.5
        %v1751 = vmul.f32 %v1705, 0.5
        %v1752 = vmul.f32 %v1744, 0.5
        %v1753 = vmul.f32 %v1746, 0.5
        %v1754 = vmul.f32 %v1703, 0.70710677
        %v1755 = vmul.f32 %v1705, 0.70710677
        %v1756 = vmul.f32 %v1744, 0.70710677
        %v1757 = vmul.f32 %v1746, 0.70710677
        %v1758 = verf.f32.pop %v1754
        %v1759 = verf.f32.pop %v1755
        %v1760 = verf.f32.pop %v1756
        %v1761 = verf.f32.pop %v1757
        %v1762 = vadd.f32 %v1758, 1.0
        %v1763 = vadd.f32 %v1759, 1.0
        %v1764 = vadd.f32 %v1760, 1.0
        %v1765 = vadd.f32 %v1761, 1.0
        %v1766 = vmul.f32 %v1750, %v1762
        %v1767 = vmul.f32 %v1751, %v1763
        %v1768 = vmul.f32 %v1752, %v1764
        %v1769 = vmul.f32 %v1753, %v1765
        %v1770 = vpack.c.bf16 %v1766, %v1766
        %v1771 = vpack.c.bf16 %v1767, %v1767
        %v1772 = vpack.c.bf16 %v1768, %v1768
        %v1773 = vpack.c.bf16 %v1769, %v1769
        %v1774 = vld [vmem:[#allocation14] sm:$0xf]
        %v1775 = vld [vmem:[#allocation14 + $0x4] sm:$0xf]
        %v1776 = vld [vmem:[#allocation14 + $0x8] sm:$0xf]
        %v1777 = vld [vmem:[#allocation14 + $0xc] sm:$0xf]
        %v1778 = vld [vmem:[#allocation14 + $0x10] sm:$0xf]
        %v1779 = vld [vmem:[#allocation14 + $0x14] sm:$0xf]
        %v1780 = vld [vmem:[#allocation14 + $0x18] sm:$0xf]
        %v1781 = vld [vmem:[#allocation14 + $0x1c] sm:$0xf]
        %v1782 = vld [vmem:[#allocation14 + $0x20] sm:$0xf]
        %v1783 = vld [vmem:[#allocation14 + $0x24] sm:$0xf]
        %v1784 = vld [vmem:[#allocation14 + $0x28] sm:$0xf]
        %v1785 = vld [vmem:[#allocation14 + $0x2c] sm:$0xf]
        %v1786 = vld [vmem:[#allocation14 + $0x30] sm:$0xf]
        %v1787 = vld [vmem:[#allocation14 + $0x34] sm:$0xf]
        %v1788 = vld [vmem:[#allocation14 + $0x38] sm:$0xf]
        %v1789 = vld [vmem:[#allocation14 + $0x3c] sm:$0xf]
        %v1790 = vld [vmem:[#allocation14 + $0x40] sm:$0xf]
        %v1791 = vld [vmem:[#allocation14 + $0x44] sm:$0xf]
        %v1792 = vld [vmem:[#allocation14 + $0x48] sm:$0xf]
        %v1793 = vld [vmem:[#allocation14 + $0x4c] sm:$0xf]
        %v1794 = vld [vmem:[#allocation14 + $0x50] sm:$0xf]
        %v1795 = vld [vmem:[#allocation14 + $0x54] sm:$0xf]
        %v1796 = vld [vmem:[#allocation14 + $0x58] sm:$0xf]
        %v1797 = vld [vmem:[#allocation14 + $0x5c] sm:$0xf]
        %v1798 = vld [vmem:[#allocation14 + $0x60] sm:$0xf]
        %v1799 = vld [vmem:[#allocation14 + $0x64] sm:$0xf]
        %v1800 = vld [vmem:[#allocation14 + $0x68] sm:$0xf]
        %v1801 = vld [vmem:[#allocation14 + $0x6c] sm:$0xf]
        %v1802 = vld [vmem:[#allocation14 + $0x70] sm:$0xf]
        %v1803 = vld [vmem:[#allocation14 + $0x74] sm:$0xf]
        %v1804 = vld [vmem:[#allocation14 + $0x78] sm:$0xf]
        %v1805 = vld [vmem:[#allocation14 + $0x7c] sm:$0xf]
        %v1806 = vld [vmem:[#allocation14 + $0x80] sm:$0xf]
        %v1807 = vld [vmem:[#allocation14 + $0x84] sm:$0xf]
        %v1808 = vld [vmem:[#allocation14 + $0x88] sm:$0xf]
        %v1809 = vld [vmem:[#allocation14 + $0x8c] sm:$0xf]
        %v1810 = vld [vmem:[#allocation14 + $0x90] sm:$0xf]
        %v1811 = vld [vmem:[#allocation14 + $0x94] sm:$0xf]
        %v1812 = vld [vmem:[#allocation14 + $0x98] sm:$0xf]
        %v1813 = vld [vmem:[#allocation14 + $0x9c] sm:$0xf]
        %v1814 = vld [vmem:[#allocation14 + $0xa0] sm:$0xf]
        %v1815 = vld [vmem:[#allocation14 + $0xa4] sm:$0xf]
        %v1816 = vld [vmem:[#allocation14 + $0xa8] sm:$0xf]
        %v1817 = vld [vmem:[#allocation14 + $0xac] sm:$0xf]
        %v1818 = vld [vmem:[#allocation14 + $0xb0] sm:$0xf]
        %v1819 = vld [vmem:[#allocation14 + $0xb4] sm:$0xf]
        %v1820 = vld [vmem:[#allocation14 + $0xb8] sm:$0xf]
        %v1821 = vld [vmem:[#allocation14 + $0xbc] sm:$0xf]
        %v1822 = vld [vmem:[#allocation14 + $0xc0] sm:$0xf]
        %v1823 = vld [vmem:[#allocation14 + $0xc4] sm:$0xf]
        %v1824 = vld [vmem:[#allocation14 + $0xc8] sm:$0xf]
        %v1825 = vld [vmem:[#allocation14 + $0xcc] sm:$0xf]
        %v1826 = vld [vmem:[#allocation14 + $0xd0] sm:$0xf]
        %v1827 = vld [vmem:[#allocation14 + $0xd4] sm:$0xf]
        %v1828 = vld [vmem:[#allocation14 + $0xd8] sm:$0xf]
        %v1829 = vld [vmem:[#allocation14 + $0xdc] sm:$0xf]
        %v1830 = vld [vmem:[#allocation14 + $0xe0] sm:$0xf]
        %v1831 = vld [vmem:[#allocation14 + $0xe4] sm:$0xf]
        %v1832 = vld [vmem:[#allocation14 + $0xe8] sm:$0xf]
        %v1833 = vld [vmem:[#allocation14 + $0xec] sm:$0xf]
        %v1834 = vld [vmem:[#allocation14 + $0xf0] sm:$0xf]
        %v1835 = vld [vmem:[#allocation14 + $0xf4] sm:$0xf]
        %v1836 = vld [vmem:[#allocation14 + $0xf8] sm:$0xf]
        %v1837 = vld [vmem:[#allocation14 + $0xfc] sm:$0xf]
        %v1838 = vld [vmem:[#allocation16] sm:$0x1]
        %v1840 = vlaneseq
        %v1841 = vshrl.u32 %v1840, 7
        %v1842 = vsub.s32 0, %v1841
        %v1843 = vrot.slane %v1838, %v1842
        %v1909 = vunpack.c.l.b16 %v1774
        %v1910 = vunpack.c.l.b16 %v1775
        %v1911 = vunpack.c.l.b16 %v1776
        %v1912 = vunpack.c.l.b16 %v1777
        %v1913 = vunpack.c.l.b16 %v1778
        %v1914 = vunpack.c.l.b16 %v1779
        %v1915 = vunpack.c.l.b16 %v1780
        %v1916 = vunpack.c.l.b16 %v1781
        %v1917 = vunpack.c.l.b16 %v1782
        %v1918 = vunpack.c.l.b16 %v1783
        %v1919 = vunpack.c.l.b16 %v1784
        %v1920 = vunpack.c.l.b16 %v1785
        %v1921 = vunpack.c.l.b16 %v1786
        %v1922 = vunpack.c.l.b16 %v1787
        %v1923 = vunpack.c.l.b16 %v1788
        %v1924 = vunpack.c.l.b16 %v1789
        %v1925 = vunpack.c.l.b16 %v1790
        %v1926 = vunpack.c.l.b16 %v1791
        %v1927 = vunpack.c.l.b16 %v1792
        %v1928 = vunpack.c.l.b16 %v1793
        %v1929 = vunpack.c.l.b16 %v1794
        %v1930 = vunpack.c.l.b16 %v1795
        %v1931 = vunpack.c.l.b16 %v1796
        %v1932 = vunpack.c.l.b16 %v1797
        %v1933 = vunpack.c.l.b16 %v1798
        %v1934 = vunpack.c.l.b16 %v1799
        %v1935 = vunpack.c.l.b16 %v1800
        %v1936 = vunpack.c.l.b16 %v1801
        %v1937 = vunpack.c.l.b16 %v1802
        %v1938 = vunpack.c.l.b16 %v1803
        %v1939 = vunpack.c.l.b16 %v1804
        %v1940 = vunpack.c.l.b16 %v1805
        %v1941 = vunpack.c.l.b16 %v1806
        %v1942 = vunpack.c.l.b16 %v1807
        %v1943 = vunpack.c.l.b16 %v1808
        %v1944 = vunpack.c.l.b16 %v1809
        %v1945 = vunpack.c.l.b16 %v1810
        %v1946 = vunpack.c.l.b16 %v1811
        %v1947 = vunpack.c.l.b16 %v1812
        %v1948 = vunpack.c.l.b16 %v1813
        %v1949 = vunpack.c.l.b16 %v1814
        %v1950 = vunpack.c.l.b16 %v1815
        %v1951 = vunpack.c.l.b16 %v1816
        %v1952 = vunpack.c.l.b16 %v1817
        %v1953 = vunpack.c.l.b16 %v1818
        %v1954 = vunpack.c.l.b16 %v1819
        %v1955 = vunpack.c.l.b16 %v1820
        %v1956 = vunpack.c.l.b16 %v1821
        %v1957 = vunpack.c.l.b16 %v1822
        %v1958 = vunpack.c.l.b16 %v1823
        %v1959 = vunpack.c.l.b16 %v1824
        %v1960 = vunpack.c.l.b16 %v1825
        %v1961 = vunpack.c.l.b16 %v1826
        %v1962 = vunpack.c.l.b16 %v1827
        %v1963 = vunpack.c.l.b16 %v1828
        %v1964 = vunpack.c.l.b16 %v1829
        %v1965 = vunpack.c.l.b16 %v1830
        %v1966 = vunpack.c.l.b16 %v1831
        %v1967 = vunpack.c.l.b16 %v1832
        %v1968 = vunpack.c.l.b16 %v1833
        %v1969 = vunpack.c.l.b16 %v1834
        %v1970 = vunpack.c.l.b16 %v1835
        %v1971 = vunpack.c.l.b16 %v1836
        %v1972 = vunpack.c.l.b16 %v1837
        %v1973 = vpack.c.b16 %v1910, %v1909
        %v1974 = vpack.c.b16 %v1912, %v1911
        %v1975 = vpack.c.b16 %v1914, %v1913
        %v1976 = vpack.c.b16 %v1916, %v1915
        %v1977 = vpack.c.b16 %v1918, %v1917
        %v1978 = vpack.c.b16 %v1920, %v1919
        %v1979 = vpack.c.b16 %v1922, %v1921
        %v1980 = vpack.c.b16 %v1924, %v1923
        %v1981 = vpack.c.b16 %v1926, %v1925
        %v1982 = vpack.c.b16 %v1928, %v1927
        %v1983 = vpack.c.b16 %v1930, %v1929
        %v1984 = vpack.c.b16 %v1932, %v1931
        %v1985 = vpack.c.b16 %v1934, %v1933
        %v1986 = vpack.c.b16 %v1936, %v1935
        %v1987 = vpack.c.b16 %v1938, %v1937
        %v1988 = vpack.c.b16 %v1940, %v1939
        %v1989 = vpack.c.b16 %v1942, %v1941
        %v1990 = vpack.c.b16 %v1944, %v1943
        %v1991 = vpack.c.b16 %v1946, %v1945
        %v1992 = vpack.c.b16 %v1948, %v1947
        %v1993 = vpack.c.b16 %v1950, %v1949
        %v1994 = vpack.c.b16 %v1952, %v1951
        %v1995 = vpack.c.b16 %v1954, %v1953
        %v1996 = vpack.c.b16 %v1956, %v1955
        %v1997 = vpack.c.b16 %v1958, %v1957
        %v1998 = vpack.c.b16 %v1960, %v1959
        %v1999 = vpack.c.b16 %v1962, %v1961
        %v2000 = vpack.c.b16 %v1964, %v1963
        %v2001 = vpack.c.b16 %v1966, %v1965
        %v2002 = vpack.c.b16 %v1968, %v1967
        %v2003 = vpack.c.b16 %v1970, %v1969
        %v2004 = vpack.c.b16 %v1972, %v1971
        %2037 = vmatprep.subr.bf16.mxu0 0
        %2038 = vmatpush1.bf16.msra.mxu0 %v1973
        %2039 = vmatprep.subr.bf16.mxu0 0
        %2040 = vmatpush1.bf16.msra.mxu0 %v1974
        %2041 = vmatprep.subr.bf16.mxu0 0
        %2042 = vmatpush1.bf16.msra.mxu0 %v1975
        %2043 = vmatprep.subr.bf16.mxu0 0
        %2044 = vmatpush1.bf16.msra.mxu0 %v1976
        %2045 = vmatprep.subr.bf16.mxu0 0
        %2046 = vmatpush1.bf16.msra.mxu0 %v1977
        %2047 = vmatprep.subr.bf16.mxu0 0
        %2048 = vmatpush1.bf16.msra.mxu0 %v1978
        %2049 = vmatprep.subr.bf16.mxu0 0
        %2050 = vmatpush1.bf16.msra.mxu0 %v1979
        %2051 = vmatprep.subr.bf16.mxu0 0
        %2052 = vmatpush1.bf16.msra.mxu0 %v1980
        %2053 = vmatprep.subr.bf16.mxu0 0
        %2054 = vmatpush1.bf16.msra.mxu0 %v1981
        %2055 = vmatprep.subr.bf16.mxu0 0
        %2056 = vmatpush1.bf16.msra.mxu0 %v1982
        %2057 = vmatprep.subr.bf16.mxu0 0
        %2058 = vmatpush1.bf16.msra.mxu0 %v1983
        %2059 = vmatprep.subr.bf16.mxu0 0
        %2060 = vmatpush1.bf16.msra.mxu0 %v1984
        %2061 = vmatprep.subr.bf16.mxu0 0
        %2062 = vmatpush1.bf16.msra.mxu0 %v1985
        %2063 = vmatprep.subr.bf16.mxu0 0
        %2064 = vmatpush1.bf16.msra.mxu0 %v1986
        %2065 = vmatprep.subr.bf16.mxu0 0
        %2066 = vmatpush1.bf16.msra.mxu0 %v1987
        %2067 = vmatprep.subr.bf16.mxu0 0
        %2068 = vmatpush1.bf16.msra.mxu0 %v1988
        %2069 = vmatprep.mubr.bf16.mxu0 %v1771
        %2070 = vmatmul.mubr.bf16.gmra.mrb[0].mxu0 %v1770
        %v2071 = vpop.f32.mrb[0].mxu0
        %v2072 = vadd.f32 %v1843, %v2071
        %v2073 = vpop.f32.mrb[0].mxu0
        %v2074 = vpop.f32.mrb[0].mxu0
        %v2075 = vpop.f32.mrb[0].mxu0
        %2076 = vdwg.mxu0
        %2077 = vmatprep.subr.bf16.mxu0 0
        %2078 = vmatpush1.bf16.msra.mxu0 %v1989
        %2079 = vmatprep.subr.bf16.mxu0 0
        %2080 = vmatpush1.bf16.msra.mxu0 %v1990
        %2081 = vmatprep.subr.bf16.mxu0 0
        %2082 = vmatpush1.bf16.msra.mxu0 %v1991
        %2083 = vmatprep.subr.bf16.mxu0 0
        %2084 = vmatpush1.bf16.msra.mxu0 %v1992
        %2085 = vmatprep.subr.bf16.mxu0 0
        %2086 = vmatpush1.bf16.msra.mxu0 %v1993
        %2087 = vmatprep.subr.bf16.mxu0 0
        %2088 = vmatpush1.bf16.msra.mxu0 %v1994
        %2089 = vmatprep.subr.bf16.mxu0 0
        %2090 = vmatpush1.bf16.msra.mxu0 %v1995
        %2091 = vmatprep.subr.bf16.mxu0 0
        %2092 = vmatpush1.bf16.msra.mxu0 %v1996
        %2093 = vmatprep.subr.bf16.mxu0 0
        %2094 = vmatpush1.bf16.msra.mxu0 %v1997
        %2095 = vmatprep.subr.bf16.mxu0 0
        %2096 = vmatpush1.bf16.msra.mxu0 %v1998
        %2097 = vmatprep.subr.bf16.mxu0 0
        %2098 = vmatpush1.bf16.msra.mxu0 %v1999
        %2099 = vmatprep.subr.bf16.mxu0 0
        %2100 = vmatpush1.bf16.msra.mxu0 %v2000
        %2101 = vmatprep.subr.bf16.mxu0 0
        %2102 = vmatpush1.bf16.msra.mxu0 %v2001
        %2103 = vmatprep.subr.bf16.mxu0 0
        %2104 = vmatpush1.bf16.msra.mxu0 %v2002
        %2105 = vmatprep.subr.bf16.mxu0 0
        %2106 = vmatpush1.bf16.msra.mxu0 %v2003
        %2107 = vmatprep.subr.bf16.mxu0 0
        %2108 = vmatpush1.bf16.msra.mxu0 %v2004
        %2109 = vmatprep.mubr.bf16.mxu0 %v1773
        %2110 = vmatmul.mubr.bf16.gmra.mrb[0].mxu0 %v1772
        %v2111 = vpop.f32.mrb[0].mxu0
        %v2112 = vadd.f32 %v2072, %v2111
        %v2113 = vpop.f32.mrb[0].mxu0
        %v2114 = vpop.f32.mrb[0].mxu0
        %v2115 = vpop.f32.mrb[0].mxu0
        %2116 = vdwg.mxu0
        %v2117 = vadd.f32 %v1441, %v2112
        %2118 = vst [vmem:[%s455] sm:$0xff] %v2117
        %s2119 = sand.u32 %s232, 1
        %s2120 = scalar_lea.sflag [#allocation4], %s2119
        %s2121 = sand.u32 %s232, 1
        %s2122 = smul.addr %s2121, 8
        %s2123 = scalar_lea.vmem [#allocation17], %s2122
        // Predicated region
        $region93: #{tpu_custom_call.1} parent=55 // pred_check
          %p2124 = pneg %p242
        $region94: #{tpu_custom_call.1} parent=55 // pred_check_branch
          %2126 = sbr.rel (%p2124) target = $region96
        $region95: #{tpu_custom_call.1} parent=55 // pred_region
          %s2128 = ssub.s32 128, 128
          %2129 = vsyncadd %s2120, %s2128
          %s2130 = smul.addr %s30, 128
          %s2131 = scalar_lea.hbm %s9, %s2130
          %s2133 = sshll.u32 %s2123, 4
          %s2134 = int_to_ptr.vmem [resolvable:$true] %s2133
          %2136 = dma.vmem_to_hbm [thread:$0]  %s2134, 128, %s2131, %s2120
        $region96: #{tpu_custom_call.1} parent=55 // pred_fallthru
          _
      $region56: #{tpu_custom_call.1} parent=5 // pred_fallthru
        _
      %p2137 = scmp.le.s32.totalorder 2, %s25
      // Predicated region
      $region97: #{tpu_custom_call.1} parent=5 // pred_check
        %p2138 = pneg %p2137
      $region98: #{tpu_custom_call.1} parent=5 // pred_check_branch
        %2140 = sbr.rel (%p2138) target = $region100
      $region99: #{tpu_custom_call.1} parent=5 // pred_region
        %s2141 = ssub.s32 %s25, 2
        // Predicated region
        $region101: #{tpu_custom_call.1} parent=99 // pred_check
          %p2142 = pneg %p248
        $region102: #{tpu_custom_call.1} parent=99 // pred_check_branch
          %2144 = sbr.rel (%p2142) target = $region104
        $region103: #{tpu_custom_call.1} parent=99 // pred_region
          %s2145 = sand.u32 %s233, 1
          %s2146 = scalar_lea.sflag [#allocation4], %s2145
          %s2147 = sand.u32 %s233, 1
          %s2148 = smul.addr %s2147, 8
          %s2149 = scalar_lea.vmem [#allocation17], %s2148
          %2150 = dma.done %s2146, 128
        $region104: #{tpu_custom_call.1} parent=99 // pred_fallthru
          _
      $region100: #{tpu_custom_call.1} parent=5 // pred_fallthru
        _
    $region6: #{tpu_custom_call.1} parent=1 // loop_footer
      %s29 = sadd.s32 1, %s25
    $region7: #{tpu_custom_call.1} parent=1 // loop_footer_branch
      %24 = sbr.rel target = $region3
    $region8: #{tpu_custom_call.1} parent=1 // loop_exit
      _
    %2151 = vsyncpa [#allocation3], 1
    %s2152 = scalar_lea.sflag [#allocation3], 1
    %2153 = vsyncpa %s2152, 1
    %2154 = vsyncpa [#allocation6], 1
    %2155 = vsyncpa [#allocation9], 1
    %2156 = vsyncpa [#allocation12], 1
    %2157 = vsyncpa [#allocation15], 1
    %2158 = vsyncpa [#allocation4], 1
    %s2159 = scalar_lea.sflag [#allocation4], 1
    %2160 = vsyncpa %s2159, 1

</llo_original>
